<compile_context>
chip_gen: v5e
topology: v5e:2x2
jax: 0.10.0
libtpu: 0.0.40
codegen_flags: <defaults>
</compile_context>

<pallas_src>
import functools

import jax
import jax.numpy as jnp
from jax.experimental import pallas as pl
from jax.experimental.pallas import tpu as pltpu

LATENT_DIM = 256
H1 = 512
H2 = 256
NEG_SLOPE = 0.2


def _round_up(x, m):
    return ((x + m - 1) // m) * m


def _leaky_relu(x):
    # max(x, 0.2*x) == LeakyReLU(0.2) and is one VALU op cheaper than
    # where(x > 0, x, 0.2*x).
    return jnp.maximum(x, NEG_SLOPE * x)


def discriminator_kernel(x_ref, w1_ref, b1_ref, w2_ref, b2_ref, w3_ref, b3_ref,
                         o_ref):
    """Fused 3-layer MLP forward on one (TB, LATENT_DIM) batch tile."""
    # Load f32 tile once from HBM, cast to bf16 on the VPU (MXU operand dtype).
    x = x_ref[...].astype(jnp.bfloat16)                       # (TB, 256)

    # Layer 1: Linear(256 -> 512), f32 accumulate on MXU; bias + LeakyReLU in
    # bf16 (also the cast the next matmul needs).
    h1 = jnp.dot(x, w1_ref[...], preferred_element_type=jnp.float32)
    h1 = _leaky_relu(h1.astype(jnp.bfloat16) + b1_ref[...])
    # Dropout(0.3): identity in eval mode.
    # TODO(synk): training-mode dropout (pltpu.prng_seed + prng_random_bits mask) not emitted.

    # Layer 2: spectral-normalized Linear(512 -> 256) (weight pre-divided by
    # sigma in the wrapper) + LeakyReLU(0.2).
    h2 = jnp.dot(h1, w2_ref[...], preferred_element_type=jnp.float32)
    h2 = _leaky_relu(h2.astype(jnp.bfloat16) + b2_ref[...])

    # Layer 3: Linear(256 -> 1) as a VPU multiply + XLU lane-reduce (no padded
    # MXU matmul, no 128-lane padded f32 writeback).
    out = jnp.sum(h2.astype(jnp.float32) * w3_ref[...], axis=-1,
                  keepdims=True) + b3_ref[...]
    o_ref[...] = out.astype(o_ref.dtype)


@functools.partial(jax.jit, static_argnames=("tile_b",))
def discriminator_forward(x, params, tile_b=1024):
    """x: (B, LATENT_DIM) float32 -> (B, 1) float32."""
    w1, b1, w2, b2, w3r, b3 = params
    B = x.shape[0]

    # Batch tile: at least 128 rows (full MXU rows, bf16 sublane-pack safe),
    # up to tile_b; pad the batch to a multiple of the tile.
    TB = max(128, min(tile_b, _round_up(B, 128)))
    Bp = _round_up(B, TB)
    if Bp != B:
        x = jnp.pad(x, ((0, Bp - B), (0, 0)))

    grid = (Bp // TB,)
    const = lambda i: (0, 0)                       # weights resident across steps

    grid_spec = pltpu.PrefetchScalarGridSpec(
        num_scalar_prefetch=0,
        grid=grid,
        in_specs=[
            pl.BlockSpec((TB, LATENT_DIM), lambda i: (i, 0)),   # x tile (f32)
            pl.BlockSpec((LATENT_DIM, H1), const),              # w1 bf16
            pl.BlockSpec((1, H1), const),                       # b1 bf16
            pl.BlockSpec((H1, H2), const),                      # w2 bf16
            pl.BlockSpec((1, H2), const),                       # b2 bf16
            pl.BlockSpec((1, H2), const),                       # w3 row f32
            pl.BlockSpec((1, 1), const),                        # b3 f32
        ],
        out_specs=pl.BlockSpec((TB, 1), lambda i: (i, 0)),
    )

    flops = 2 * Bp * (LATENT_DIM * H1 + H1 * H2) + 2 * Bp * H2
    bytes_accessed = (
        Bp * LATENT_DIM * 4                       # x (f32, read once by kernel)
        + (w1.size + w2.size) * 2                 # bf16 weights
        + (b1.size + b2.size) * 2
        + (w3r.size + b3.size) * 4
        + Bp * 4                                  # (Bp, 1) f32 output
    )

    out = pl.pallas_call(
        discriminator_kernel,
        out_shape=jax.ShapeDtypeStruct((Bp, 1), jnp.float32),
        grid_spec=grid_spec,
        compiler_params=pltpu.CompilerParams(
            dimension_semantics=("parallel",)),
        cost_estimate=pl.CostEstimate(
            flops=flops, bytes_accessed=bytes_accessed, transcendentals=0),
    )(x, w1, b1, w2, b2, w3r, b3)

    return out[:B]


def _linear_init(key, fan_in, fan_out):
    """PyTorch Linear default init (uniform +/- 1/sqrt(fan_in)).

    Returns weight transposed to (fan_in, fan_out) and bias of shape (1, fan_out).
    """
    kw, kb = jax.random.split(key)
    bound = 1.0 / jnp.sqrt(fan_in)
    w = jax.random.uniform(kw, (fan_in, fan_out), jnp.float32, -bound, bound)
    b = jax.random.uniform(kb, (1, fan_out), jnp.float32, -bound, bound)
    return w, b


def _spectral_normalize(w_t, key, n_iters=10):
    """Divide weight by its largest singular value (power iteration).

    Matches the forward effect of torch.nn.utils.spectral_norm (weight / sigma).
    TODO(synk): torch persists `u` and runs one iteration per forward; this is a
    one-shot parameter-build-time approximation (fine for frozen/inference use).
    """
    out_dim = w_t.shape[1]
    u = jax.random.normal(key, (out_dim,), jnp.float32)
    u = u / (jnp.linalg.norm(u) + 1e-12)
    w = w_t.T  # (out, in), PyTorch layout
    for _ in range(n_iters):
        v = w.T @ u
        v = v / (jnp.linalg.norm(v) + 1e-12)
        u = w @ v
        u = u / (jnp.linalg.norm(u) + 1e-12)
    sigma = u @ (w @ v)
    return w_t / sigma


def make_params(key):
    """Build bf16 matmul weights; layer 3 kept as a (1, H2) f32 row + scalar bias."""
    k1, k2, k3, ksn = jax.random.split(key, 4)
    w1, b1 = _linear_init(k1, LATENT_DIM, H1)
    w2, b2 = _linear_init(k2, H1, H2)
    w3, b3 = _linear_init(k3, H2, 1)
    w2 = _spectral_normalize(w2, ksn)

    w3r = w3.T                      # (1, H2) f32 row, used as VPU mul + reduce
    b3 = b3.reshape(1, 1)           # (1, 1) f32

    return (w1.astype(jnp.bfloat16), b1.astype(jnp.bfloat16),
            w2.astype(jnp.bfloat16), b2.astype(jnp.bfloat16),
            w3r, b3)


def reference_forward(x, params):
    """Plain-JAX reference with the same bf16-operand / f32-accumulate math."""
    w1, b1, w2, b2, w3r, b3 = params
    xb = x.astype(jnp.bfloat16)
    h1 = _leaky_relu(
        jnp.dot(xb, w1, preferred_element_type=jnp.float32).astype(jnp.bfloat16)
        + b1)
    h2 = _leaky_relu(
        jnp.dot(h1, w2, preferred_element_type=jnp.float32).astype(jnp.bfloat16)
        + b2)
    out = jnp.sum(h2.astype(jnp.float32) * w3r, axis=-1, keepdims=True) + b3
    return out


if __name__ == "__main__":
    key = jax.random.PRNGKey(0)
    kx, kp = jax.random.split(key)

    B = 32  # small demo batch; wrapper pads to one 128-row tile
    x = jax.random.normal(kx, (B, LATENT_DIM), jnp.float32)
    params = make_params(kp)

    out = discriminator_forward(x, params)
    out = jax.block_until_ready(out)

    ref = reference_forward(x, params)
    assert out.shape == (B, 1)
    assert jnp.allclose(out, ref, atol=5e-3, rtol=5e-3), "mismatch vs reference"

    print("KERNEL_OK")
</pallas_src>

<mosaic_0001>
module attributes {stable_mosaic.version = 11 : i64} {
  func.func @discriminator_kernel(%arg0: i32, %arg1: memref<128x256xf32, #tpu.memory_space<vmem>>, %arg2: memref<256x512xbf16, #tpu.memory_space<vmem>>, %arg3: memref<1x512xbf16, #tpu.memory_space<vmem>>, %arg4: memref<512x256xbf16, #tpu.memory_space<vmem>>, %arg5: memref<1x256xbf16, #tpu.memory_space<vmem>>, %arg6: memref<1x256xf32, #tpu.memory_space<vmem>>, %arg7: memref<1x1xf32, #tpu.memory_space<vmem>>, %arg8: memref<128x1xf32, #tpu.memory_space<vmem>>) attributes {dimension_semantics = [#tpu.dimension_semantics<parallel>], iteration_bounds = array<i64: 1>, scalar_prefetch = 0 : i64, scratch_operands = 0 : i64, tpu.core_type = #tpu.core_type<tc>, window_params = [{transform_indices = @transform_0, window_bounds = array<i64: 128, 256>}, {pipeline_mode = #tpu.pipeline_mode<synchronous>, transform_indices = @transform_1, window_bounds = array<i64: 256, 512>}, {pipeline_mode = #tpu.pipeline_mode<synchronous>, transform_indices = @transform_2, window_bounds = array<i64: 1, 512>}, {pipeline_mode = #tpu.pipeline_mode<synchronous>, transform_indices = @transform_3, window_bounds = array<i64: 512, 256>}, {pipeline_mode = #tpu.pipeline_mode<synchronous>, transform_indices = @transform_4, window_bounds = array<i64: 1, 256>}, {pipeline_mode = #tpu.pipeline_mode<synchronous>, transform_indices = @transform_5, window_bounds = array<i64: 1, 256>}, {pipeline_mode = #tpu.pipeline_mode<synchronous>, transform_indices = @transform_6, window_bounds = array<i64: 1, 1>}, {transform_indices = @transform_7, window_bounds = array<i64: 128, 1>}]} {
    %c0 = arith.constant 0 : index
    %c0_0 = arith.constant 0 : index
    %0 = vector.load %arg1[%c0, %c0_0] : memref<128x256xf32, #tpu.memory_space<vmem>>, vector<128x256xf32>
    %1 = arith.truncf %0 : vector<128x256xf32> to vector<128x256xbf16>
    %c0_1 = arith.constant 0 : index
    %c0_2 = arith.constant 0 : index
    %2 = vector.load %arg2[%c0_1, %c0_2] : memref<256x512xbf16, #tpu.memory_space<vmem>>, vector<256x512xbf16>
    %cst = arith.constant dense<0.000000e+00> : vector<128x512xf32>
    %3 = tpu.matmul %1, %2, %cst {dimension_numbers = #tpu.dot_dimension_numbers<[1], [0], [0], [1], [0, 0, 1, 1], [], []>} : vector<128x256xbf16>, vector<256x512xbf16>, vector<128x512xf32> -> vector<128x512xf32>
    %4 = arith.truncf %3 : vector<128x512xf32> to vector<128x512xbf16>
    %c0_3 = arith.constant 0 : index
    %c0_4 = arith.constant 0 : index
    %5 = vector.load %arg3[%c0_3, %c0_4] : memref<1x512xbf16, #tpu.memory_space<vmem>>, vector<1x512xbf16>
    %6 = vector.broadcast %5 : vector<1x512xbf16> to vector<128x512xbf16>
    %7 = arith.addf %4, %6 : vector<128x512xbf16>
    %cst_5 = arith.constant 2.001950e-01 : bf16
    %8 = vector.broadcast %cst_5 : bf16 to vector<128x512xbf16>
    %9 = arith.mulf %8, %7 : vector<128x512xbf16>
    %10 = arith.maximumf %7, %9 : vector<128x512xbf16>
    %c0_6 = arith.constant 0 : index
    %c0_7 = arith.constant 0 : index
    %11 = vector.load %arg4[%c0_6, %c0_7] : memref<512x256xbf16, #tpu.memory_space<vmem>>, vector<512x256xbf16>
    %cst_8 = arith.constant dense<0.000000e+00> : vector<128x256xf32>
    %12 = tpu.matmul %10, %11, %cst_8 {dimension_numbers = #tpu.dot_dimension_numbers<[1], [0], [0], [1], [0, 0, 1, 1], [], []>} : vector<128x512xbf16>, vector<512x256xbf16>, vector<128x256xf32> -> vector<128x256xf32>
    %13 = arith.truncf %12 : vector<128x256xf32> to vector<128x256xbf16>
    %c0_9 = arith.constant 0 : index
    %c0_10 = arith.constant 0 : index
    %14 = vector.load %arg5[%c0_9, %c0_10] : memref<1x256xbf16, #tpu.memory_space<vmem>>, vector<1x256xbf16>
    %15 = vector.broadcast %14 : vector<1x256xbf16> to vector<128x256xbf16>
    %16 = arith.addf %13, %15 : vector<128x256xbf16>
    %cst_11 = arith.constant 2.001950e-01 : bf16
    %17 = vector.broadcast %cst_11 : bf16 to vector<128x256xbf16>
    %18 = arith.mulf %17, %16 : vector<128x256xbf16>
    %19 = arith.maximumf %16, %18 : vector<128x256xbf16>
    %20 = arith.extf %19 : vector<128x256xbf16> to vector<128x256xf32>
    %c0_12 = arith.constant 0 : index
    %c0_13 = arith.constant 0 : index
    %21 = vector.load %arg6[%c0_12, %c0_13] : memref<1x256xf32, #tpu.memory_space<vmem>>, vector<1x256xf32>
    %22 = vector.broadcast %21 : vector<1x256xf32> to vector<128x256xf32>
    %23 = arith.mulf %20, %22 : vector<128x256xf32>
    %cst_14 = arith.constant dense<0.000000e+00> : vector<128xf32>
    %24 = vector.multi_reduction <add>, %23, %cst_14 [1] : vector<128x256xf32> to vector<128xf32>
    %25 = vector.shape_cast %24 : vector<128xf32> to vector<128x1xf32>
    %c0_15 = arith.constant 0 : index
    %c0_16 = arith.constant 0 : index
    %26 = vector.load %arg7[%c0_15, %c0_16] : memref<1x1xf32, #tpu.memory_space<vmem>>, vector<1x1xf32>
    %27 = vector.broadcast %26 : vector<1x1xf32> to vector<128x1xf32>
    %28 = arith.addf %25, %27 : vector<128x1xf32>
    %c0_17 = arith.constant 0 : index
    %c0_18 = arith.constant 0 : index
    %29 = vector.load %arg8[%c0_17, %c0_18] : memref<128x1xf32, #tpu.memory_space<vmem>>, vector<128x1xf32>
    tpu.vector_store %arg8[%c0_17, %c0_18], %28 {strides = array<i32>} : memref<128x1xf32, #tpu.memory_space<vmem>>, vector<128x1xf32>,
    return
  }
  func.func @transform_0(%arg0: i32) -> (i32, i32) {
    %c0_i32 = arith.constant 0 : i32
    %c0_i32_0 = arith.constant 0 : i32
    return %arg0, %c0_i32 : i32, i32
  }
  func.func @transform_1(%arg0: i32) -> (i32, i32) {
    %c0_i32 = arith.constant 0 : i32
    %c0_i32_0 = arith.constant 0 : i32
    %c0_i32_1 = arith.constant 0 : i32
    return %c0_i32, %c0_i32_0 : i32, i32
  }
  func.func @transform_2(%arg0: i32) -> (i32, i32) {
    %c0_i32 = arith.constant 0 : i32
    %c0_i32_0 = arith.constant 0 : i32
    %c0_i32_1 = arith.constant 0 : i32
    return %c0_i32, %c0_i32_0 : i32, i32
  }
  func.func @transform_3(%arg0: i32) -> (i32, i32) {
    %c0_i32 = arith.constant 0 : i32
    %c0_i32_0 = arith.constant 0 : i32
    %c0_i32_1 = arith.constant 0 : i32
    return %c0_i32, %c0_i32_0 : i32, i32
  }
  func.func @transform_4(%arg0: i32) -> (i32, i32) {
    %c0_i32 = arith.constant 0 : i32
    %c0_i32_0 = arith.constant 0 : i32
    %c0_i32_1 = arith.constant 0 : i32
    return %c0_i32, %c0_i32_0 : i32, i32
  }
  func.func @transform_5(%arg0: i32) -> (i32, i32) {
    %c0_i32 = arith.constant 0 : i32
    %c0_i32_0 = arith.constant 0 : i32
    %c0_i32_1 = arith.constant 0 : i32
    return %c0_i32, %c0_i32_0 : i32, i32
  }
  func.func @transform_6(%arg0: i32) -> (i32, i32) {
    %c0_i32 = arith.constant 0 : i32
    %c0_i32_0 = arith.constant 0 : i32
    %c0_i32_1 = arith.constant 0 : i32
    return %c0_i32, %c0_i32_0 : i32, i32
  }
  func.func @transform_7(%arg0: i32) -> (i32, i32) {
    %c0_i32 = arith.constant 0 : i32
    %c0_i32_0 = arith.constant 0 : i32
    return %arg0, %c0_i32 : i32, i32
  }
}

</mosaic_0001>

<llo_original>
// kernel: discriminator_forward.1
$region0: #{discriminator_forward.1}
  #allocation0 [shape = 'u32[]', space=smem, size = 0x4, offset = 0x4, fixed_abs, tag = 'smem constant byte address 0x4 - core index']
  #allocation1 [shape = 'u32[72,128]{1,0:T(1,128)}', space=vmem, size = 0x9000, scoped, tag = 'internal scratch']
  #allocation2 [shape = 'f32[1,1]{1,0:T(1,128)S(1)}', space=vmem, size = 0x200, scoped, tag = 'scoped memory for discriminator_forward.1']
  %s0 = inlined_call_operand.vmem [shape: f32[128,256], index: 0, kind: input, shape index: {}]
  %s1 = inlined_call_operand.hbm [shape: bf16[256,512], index: 1, kind: input, shape index: {}]
  %s2 = inlined_call_operand.vmem [shape: bf16[1,512], index: 2, kind: input, shape index: {}]
  %s3 = inlined_call_operand.hbm [shape: bf16[512,256], index: 3, kind: input, shape index: {}]
  %s4 = inlined_call_operand.vmem [shape: bf16[1,256], index: 4, kind: input, shape index: {}]
  %s5 = inlined_call_operand.vmem [shape: f32[1,256], index: 5, kind: input, shape index: {}]
  %s6 = inlined_call_operand.<no memory space> [shape: f32[1,1], index: 6, kind: input, shape index: {}]
  %s7 = inlined_call_operand.vmem [shape: f32[128,1], index: 7, kind: output, shape index: {}]
  %s8 = sld [smem:[#allocation0]]
  $region46: #{discriminator_forward.1} parent=0
    _
  %s10 = ssub.s32 1, %s8
  %s11 = scalar_select 0, %s10, %s8
  %v12 = vstv %s6
  %13 = vst [vmem:[#allocation2] sm:$0x1] %v12
  $region1: #{discriminator_forward.1} parent=0
    #allocation3 [shape = 'u8[262144]{0}', space=vmem, size = 0x40000, scoped, tag = 'input window, operand 1, single buffered']
    #allocation4 [shape = 's32[1]{0}', space=sflag, size = 0x4, scoped, tag = 'scoped memory for discriminator_forward.1']
    #allocation5 [shape = 'u8[262144]{0}', space=vmem, size = 0x40000, scoped, tag = 'input window, operand 3, single buffered']
    #allocation6 [shape = 's32[1]{0}', space=sflag, size = 0x4, scoped, tag = 'scoped memory for discriminator_forward.1']
    %14 = vsyncpa [#allocation4], 0
    %15 = vsyncpa [#allocation6], 0
    // Predicated region
    $region2: #{discriminator_forward.1} parent=1 // pred_check
      _
    $region3: #{discriminator_forward.1} parent=1 // pred_check_branch
      %17 = sbr.rel (0) target = $region5
    $region4: #{discriminator_forward.1} parent=1 // pred_region
      _
    $region5: #{discriminator_forward.1} parent=1 // pred_fallthru
      _
    // Predicated region
    $region6: #{discriminator_forward.1} parent=1 // pred_check
      _
    $region7: #{discriminator_forward.1} parent=1 // pred_check_branch
      %19 = sbr.rel (0) target = $region9
    $region8: #{discriminator_forward.1} parent=1 // pred_region
      %21 = vsyncadd [#allocation4], 0
      %s22 = sshll.u32 %s1, 4
      %s23 = int_to_ptr.hbm [resolvable:$true] %s22
      %s24 = sshll.u32 [#allocation3], 4
      %s25 = int_to_ptr.vmem [resolvable:$true] %s24
      %30 = dma.hbm_to_vmem [thread:$0]  %s23, 8192, %s25, [#allocation4], 256, 256, 16
    $region9: #{discriminator_forward.1} parent=1 // pred_fallthru
      _
    // Predicated region
    $region10: #{discriminator_forward.1} parent=1 // pred_check
      _
    $region11: #{discriminator_forward.1} parent=1 // pred_check_branch
      %32 = sbr.rel (0) target = $region13
    $region12: #{discriminator_forward.1} parent=1 // pred_region
      _
    $region13: #{discriminator_forward.1} parent=1 // pred_fallthru
      _
    // Predicated region
    $region14: #{discriminator_forward.1} parent=1 // pred_check
      _
    $region15: #{discriminator_forward.1} parent=1 // pred_check_branch
      %34 = sbr.rel (0) target = $region17
    $region16: #{discriminator_forward.1} parent=1 // pred_region
      %36 = vsyncadd [#allocation6], 0
      %s37 = sshll.u32 %s3, 4
      %s38 = int_to_ptr.hbm [resolvable:$true] %s37
      %s39 = sshll.u32 [#allocation5], 4
      %s40 = int_to_ptr.vmem [resolvable:$true] %s39
      %45 = dma.hbm_to_vmem [thread:$0]  %s38, 8192, %s40, [#allocation6], 128, 128, 8
    $region17: #{discriminator_forward.1} parent=1 // pred_fallthru
      _
    // Predicated region
    $region18: #{discriminator_forward.1} parent=1 // pred_check
      _
    $region19: #{discriminator_forward.1} parent=1 // pred_check_branch
      %47 = sbr.rel (0) target = $region21
    $region20: #{discriminator_forward.1} parent=1 // pred_region
      _
    $region21: #{discriminator_forward.1} parent=1 // pred_fallthru
      _
    // Predicated region
    $region22: #{discriminator_forward.1} parent=1 // pred_check
      _
    $region23: #{discriminator_forward.1} parent=1 // pred_check_branch
      %49 = sbr.rel (0) target = $region25
    $region24: #{discriminator_forward.1} parent=1 // pred_region
      _
    $region25: #{discriminator_forward.1} parent=1 // pred_fallthru
      _
    // Predicated region
    $region26: #{discriminator_forward.1} parent=1 // pred_check
      _
    $region27: #{discriminator_forward.1} parent=1 // pred_check_branch
      %51 = sbr.rel (0) target = $region29
    $region28: #{discriminator_forward.1} parent=1 // pred_region
      _
    $region29: #{discriminator_forward.1} parent=1 // pred_fallthru
      _
    // Predicated region
    $region30: #{discriminator_forward.1} parent=1 // pred_check
      _
    $region31: #{discriminator_forward.1} parent=1 // pred_check_branch
      %53 = sbr.rel (0) target = $region33
    $region32: #{discriminator_forward.1} parent=1 // pred_region
      %55 = dma.done [#allocation4], 8192
    $region33: #{discriminator_forward.1} parent=1 // pred_fallthru
      _
    // Predicated region
    $region34: #{discriminator_forward.1} parent=1 // pred_check
      _
    $region35: #{discriminator_forward.1} parent=1 // pred_check_branch
      %57 = sbr.rel (0) target = $region37
    $region36: #{discriminator_forward.1} parent=1 // pred_region
      %59 = dma.done [#allocation6], 8192
    $region37: #{discriminator_forward.1} parent=1 // pred_fallthru
      _
    %v60 = vld [vmem:[%s0] sm:$0xff]
    %v61 = vld [vmem:[%s0 + $0x8] sm:$0xff]
    %v62 = vld [vmem:[%s0 + $0x10] sm:$0xff]
    %v63 = vld [vmem:[%s0 + $0x18] sm:$0xff]
    %v64 = vld [vmem:[%s0 + $0x20] sm:$0xff]
    %v65 = vld [vmem:[%s0 + $0x28] sm:$0xff]
    %v66 = vld [vmem:[%s0 + $0x30] sm:$0xff]
    %v67 = vld [vmem:[%s0 + $0x38] sm:$0xff]
    %v68 = vld [vmem:[%s0 + $0x40] sm:$0xff]
    %v69 = vld [vmem:[%s0 + $0x48] sm:$0xff]
    %v70 = vld [vmem:[%s0 + $0x50] sm:$0xff]
    %v71 = vld [vmem:[%s0 + $0x58] sm:$0xff]
    %v72 = vld [vmem:[%s0 + $0x60] sm:$0xff]
    %v73 = vld [vmem:[%s0 + $0x68] sm:$0xff]
    %v74 = vld [vmem:[%s0 + $0x70] sm:$0xff]
    %v75 = vld [vmem:[%s0 + $0x78] sm:$0xff]
    %v76 = vld [vmem:[%s0 + $0x80] sm:$0xff]
    %v77 = vld [vmem:[%s0 + $0x88] sm:$0xff]
    %v78 = vld [vmem:[%s0 + $0x90] sm:$0xff]
    %v79 = vld [vmem:[%s0 + $0x98] sm:$0xff]
    %v80 = vld [vmem:[%s0 + $0xa0] sm:$0xff]
    %v81 = vld [vmem:[%s0 + $0xa8] sm:$0xff]
    %v82 = vld [vmem:[%s0 + $0xb0] sm:$0xff]
    %v83 = vld [vmem:[%s0 + $0xb8] sm:$0xff]
    %v84 = vld [vmem:[%s0 + $0xc0] sm:$0xff]
    %v85 = vld [vmem:[%s0 + $0xc8] sm:$0xff]
    %v86 = vld [vmem:[%s0 + $0xd0] sm:$0xff]
    %v87 = vld [vmem:[%s0 + $0xd8] sm:$0xff]
    %v88 = vld [vmem:[%s0 + $0xe0] sm:$0xff]
    %v89 = vld [vmem:[%s0 + $0xe8] sm:$0xff]
    %v90 = vld [vmem:[%s0 + $0xf0] sm:$0xff]
    %v91 = vld [vmem:[%s0 + $0xf8] sm:$0xff]
    %v92 = vpack.c.bf16 %v62, %v60
    %v93 = vpack.c.bf16 %v63, %v61
    %v94 = vpack.c.bf16 %v66, %v64
    %v95 = vpack.c.bf16 %v67, %v65
    %v96 = vpack.c.bf16 %v70, %v68
    %v97 = vpack.c.bf16 %v71, %v69
    %v98 = vpack.c.bf16 %v74, %v72
    %v99 = vpack.c.bf16 %v75, %v73
    %v100 = vpack.c.bf16 %v78, %v76
    %v101 = vpack.c.bf16 %v79, %v77
    %v102 = vpack.c.bf16 %v82, %v80
    %v103 = vpack.c.bf16 %v83, %v81
    %v104 = vpack.c.bf16 %v86, %v84
    %v105 = vpack.c.bf16 %v87, %v85
    %v106 = vpack.c.bf16 %v90, %v88
    %v107 = vpack.c.bf16 %v91, %v89
    %v108 = vld [vmem:[#allocation3] sm:$0xff]
    %v109 = vld [vmem:[#allocation3 + $0x8] sm:$0xff]
    %v110 = vld [vmem:[#allocation3 + $0x10] sm:$0xff]
    %v111 = vld [vmem:[#allocation3 + $0x18] sm:$0xff]
    %v112 = vld [vmem:[#allocation3 + $0x20] sm:$0xff]
    %v113 = vld [vmem:[#allocation3 + $0x28] sm:$0xff]
    %v114 = vld [vmem:[#allocation3 + $0x30] sm:$0xff]
    %v115 = vld [vmem:[#allocation3 + $0x38] sm:$0xff]
    %v116 = vld [vmem:[#allocation3 + $0x40] sm:$0xff]
    %v117 = vld [vmem:[#allocation3 + $0x48] sm:$0xff]
    %v118 = vld [vmem:[#allocation3 + $0x50] sm:$0xff]
    %v119 = vld [vmem:[#allocation3 + $0x58] sm:$0xff]
    %v120 = vld [vmem:[#allocation3 + $0x60] sm:$0xff]
    %v121 = vld [vmem:[#allocation3 + $0x68] sm:$0xff]
    %v122 = vld [vmem:[#allocation3 + $0x70] sm:$0xff]
    %v123 = vld [vmem:[#allocation3 + $0x78] sm:$0xff]
    %v124 = vld [vmem:[#allocation3 + $0x80] sm:$0xff]
    %v125 = vld [vmem:[#allocation3 + $0x88] sm:$0xff]
    %v126 = vld [vmem:[#allocation3 + $0x90] sm:$0xff]
    %v127 = vld [vmem:[#allocation3 + $0x98] sm:$0xff]
    %v128 = vld [vmem:[#allocation3 + $0xa0] sm:$0xff]
    %v129 = vld [vmem:[#allocation3 + $0xa8] sm:$0xff]
    %v130 = vld [vmem:[#allocation3 + $0xb0] sm:$0xff]
    %v131 = vld [vmem:[#allocation3 + $0xb8] sm:$0xff]
    %v132 = vld [vmem:[#allocation3 + $0xc0] sm:$0xff]
    %v133 = vld [vmem:[#allocation3 + $0xc8] sm:$0xff]
    %v134 = vld [vmem:[#allocation3 + $0xd0] sm:$0xff]
    %v135 = vld [vmem:[#allocation3 + $0xd8] sm:$0xff]
    %v136 = vld [vmem:[#allocation3 + $0xe0] sm:$0xff]
    %v137 = vld [vmem:[#allocation3 + $0xe8] sm:$0xff]
    %v138 = vld [vmem:[#allocation3 + $0xf0] sm:$0xff]
    %v139 = vld [vmem:[#allocation3 + $0xf8] sm:$0xff]
    %v140 = vld [vmem:[#allocation3 + $0x100] sm:$0xff]
    %v141 = vld [vmem:[#allocation3 + $0x108] sm:$0xff]
    %v142 = vld [vmem:[#allocation3 + $0x110] sm:$0xff]
    %v143 = vld [vmem:[#allocation3 + $0x118] sm:$0xff]
    %v144 = vld [vmem:[#allocation3 + $0x120] sm:$0xff]
    %v145 = vld [vmem:[#allocation3 + $0x128] sm:$0xff]
    %v146 = vld [vmem:[#allocation3 + $0x130] sm:$0xff]
    %v147 = vld [vmem:[#allocation3 + $0x138] sm:$0xff]
    %v148 = vld [vmem:[#allocation3 + $0x140] sm:$0xff]
    %v149 = vld [vmem:[#allocation3 + $0x148] sm:$0xff]
    %v150 = vld [vmem:[#allocation3 + $0x150] sm:$0xff]
    %v151 = vld [vmem:[#allocation3 + $0x158] sm:$0xff]
    %v152 = vld [vmem:[#allocation3 + $0x160] sm:$0xff]
    %v153 = vld [vmem:[#allocation3 + $0x168] sm:$0xff]
    %v154 = vld [vmem:[#allocation3 + $0x170] sm:$0xff]
    %v155 = vld [vmem:[#allocation3 + $0x178] sm:$0xff]
    %v156 = vld [vmem:[#allocation3 + $0x180] sm:$0xff]
    %v157 = vld [vmem:[#allocation3 + $0x188] sm:$0xff]
    %v158 = vld [vmem:[#allocation3 + $0x190] sm:$0xff]
    %v159 = vld [vmem:[#allocation3 + $0x198] sm:$0xff]
    %v160 = vld [vmem:[#allocation3 + $0x1a0] sm:$0xff]
    %v161 = vld [vmem:[#allocation3 + $0x1a8] sm:$0xff]
    %v162 = vld [vmem:[#allocation3 + $0x1b0] sm:$0xff]
    %v163 = vld [vmem:[#allocation3 + $0x1b8] sm:$0xff]
    %v164 = vld [vmem:[#allocation3 + $0x1c0] sm:$0xff]
    %v165 = vld [vmem:[#allocation3 + $0x1c8] sm:$0xff]
    %v166 = vld [vmem:[#allocation3 + $0x1d0] sm:$0xff]
    %v167 = vld [vmem:[#allocation3 + $0x1d8] sm:$0xff]
    %v168 = vld [vmem:[#allocation3 + $0x1e0] sm:$0xff]
    %v169 = vld [vmem:[#allocation3 + $0x1e8] sm:$0xff]
    %v170 = vld [vmem:[#allocation3 + $0x1f0] sm:$0xff]
    %v171 = vld [vmem:[#allocation3 + $0x1f8] sm:$0xff]
    %v236 = vunpack.c.l.b16 %v108
    %v237 = vunpack.c.h.b16 %v108
    %v238 = vunpack.c.l.b16 %v109
    %v239 = vunpack.c.h.b16 %v109
    %v240 = vunpack.c.l.b16 %v110
    %v241 = vunpack.c.h.b16 %v110
    %v242 = vunpack.c.l.b16 %v111
    %v243 = vunpack.c.h.b16 %v111
    %v244 = vunpack.c.l.b16 %v112
    %v245 = vunpack.c.h.b16 %v112
    %v246 = vunpack.c.l.b16 %v113
    %v247 = vunpack.c.h.b16 %v113
    %v248 = vunpack.c.l.b16 %v114
    %v249 = vunpack.c.h.b16 %v114
    %v250 = vunpack.c.l.b16 %v115
    %v251 = vunpack.c.h.b16 %v115
    %v252 = vunpack.c.l.b16 %v116
    %v253 = vunpack.c.h.b16 %v116
    %v254 = vunpack.c.l.b16 %v117
    %v255 = vunpack.c.h.b16 %v117
    %v256 = vunpack.c.l.b16 %v118
    %v257 = vunpack.c.h.b16 %v118
    %v258 = vunpack.c.l.b16 %v119
    %v259 = vunpack.c.h.b16 %v119
    %v260 = vunpack.c.l.b16 %v120
    %v261 = vunpack.c.h.b16 %v120
    %v262 = vunpack.c.l.b16 %v121
    %v263 = vunpack.c.h.b16 %v121
    %v264 = vunpack.c.l.b16 %v122
    %v265 = vunpack.c.h.b16 %v122
    %v266 = vunpack.c.l.b16 %v123
    %v267 = vunpack.c.h.b16 %v123
    %v268 = vunpack.c.l.b16 %v124
    %v269 = vunpack.c.h.b16 %v124
    %v270 = vunpack.c.l.b16 %v125
    %v271 = vunpack.c.h.b16 %v125
    %v272 = vunpack.c.l.b16 %v126
    %v273 = vunpack.c.h.b16 %v126
    %v274 = vunpack.c.l.b16 %v127
    %v275 = vunpack.c.h.b16 %v127
    %v276 = vunpack.c.l.b16 %v128
    %v277 = vunpack.c.h.b16 %v128
    %v278 = vunpack.c.l.b16 %v129
    %v279 = vunpack.c.h.b16 %v129
    %v280 = vunpack.c.l.b16 %v130
    %v281 = vunpack.c.h.b16 %v130
    %v282 = vunpack.c.l.b16 %v131
    %v283 = vunpack.c.h.b16 %v131
    %v284 = vunpack.c.l.b16 %v132
    %v285 = vunpack.c.h.b16 %v132
    %v286 = vunpack.c.l.b16 %v133
    %v287 = vunpack.c.h.b16 %v133
    %v288 = vunpack.c.l.b16 %v134
    %v289 = vunpack.c.h.b16 %v134
    %v290 = vunpack.c.l.b16 %v135
    %v291 = vunpack.c.h.b16 %v135
    %v292 = vunpack.c.l.b16 %v136
    %v293 = vunpack.c.h.b16 %v136
    %v294 = vunpack.c.l.b16 %v137
    %v295 = vunpack.c.h.b16 %v137
    %v296 = vunpack.c.l.b16 %v138
    %v297 = vunpack.c.h.b16 %v138
    %v298 = vunpack.c.l.b16 %v139
    %v299 = vunpack.c.h.b16 %v139
    %v300 = vunpack.c.l.b16 %v140
    %v301 = vunpack.c.h.b16 %v140
    %v302 = vunpack.c.l.b16 %v141
    %v303 = vunpack.c.h.b16 %v141
    %v304 = vunpack.c.l.b16 %v142
    %v305 = vunpack.c.h.b16 %v142
    %v306 = vunpack.c.l.b16 %v143
    %v307 = vunpack.c.h.b16 %v143
    %v308 = vunpack.c.l.b16 %v144
    %v309 = vunpack.c.h.b16 %v144
    %v310 = vunpack.c.l.b16 %v145
    %v311 = vunpack.c.h.b16 %v145
    %v312 = vunpack.c.l.b16 %v146
    %v313 = vunpack.c.h.b16 %v146
    %v314 = vunpack.c.l.b16 %v147
    %v315 = vunpack.c.h.b16 %v147
    %v316 = vunpack.c.l.b16 %v148
    %v317 = vunpack.c.h.b16 %v148
    %v318 = vunpack.c.l.b16 %v149
    %v319 = vunpack.c.h.b16 %v149
    %v320 = vunpack.c.l.b16 %v150
    %v321 = vunpack.c.h.b16 %v150
    %v322 = vunpack.c.l.b16 %v151
    %v323 = vunpack.c.h.b16 %v151
    %v324 = vunpack.c.l.b16 %v152
    %v325 = vunpack.c.h.b16 %v152
    %v326 = vunpack.c.l.b16 %v153
    %v327 = vunpack.c.h.b16 %v153
    %v328 = vunpack.c.l.b16 %v154
    %v329 = vunpack.c.h.b16 %v154
    %v330 = vunpack.c.l.b16 %v155
    %v331 = vunpack.c.h.b16 %v155
    %v332 = vunpack.c.l.b16 %v156
    %v333 = vunpack.c.h.b16 %v156
    %v334 = vunpack.c.l.b16 %v157
    %v335 = vunpack.c.h.b16 %v157
    %v336 = vunpack.c.l.b16 %v158
    %v337 = vunpack.c.h.b16 %v158
    %v338 = vunpack.c.l.b16 %v159
    %v339 = vunpack.c.h.b16 %v159
    %v340 = vunpack.c.l.b16 %v160
    %v341 = vunpack.c.h.b16 %v160
    %v342 = vunpack.c.l.b16 %v161
    %v343 = vunpack.c.h.b16 %v161
    %v344 = vunpack.c.l.b16 %v162
    %v345 = vunpack.c.h.b16 %v162
    %v346 = vunpack.c.l.b16 %v163
    %v347 = vunpack.c.h.b16 %v163
    %v348 = vunpack.c.l.b16 %v164
    %v349 = vunpack.c.h.b16 %v164
    %v350 = vunpack.c.l.b16 %v165
    %v351 = vunpack.c.h.b16 %v165
    %v352 = vunpack.c.l.b16 %v166
    %v353 = vunpack.c.h.b16 %v166
    %v354 = vunpack.c.l.b16 %v167
    %v355 = vunpack.c.h.b16 %v167
    %v356 = vunpack.c.l.b16 %v168
    %v357 = vunpack.c.h.b16 %v168
    %v358 = vunpack.c.l.b16 %v169
    %v359 = vunpack.c.h.b16 %v169
    %v360 = vunpack.c.l.b16 %v170
    %v361 = vunpack.c.h.b16 %v170
    %v362 = vunpack.c.l.b16 %v171
    %v363 = vunpack.c.h.b16 %v171
    %v364 = vpack.c.b16 %v240, %v236
    %v365 = vpack.c.b16 %v241, %v237
    %v366 = vpack.c.b16 %v242, %v238
    %v367 = vpack.c.b16 %v243, %v239
    %v368 = vpack.c.b16 %v248, %v244
    %v369 = vpack.c.b16 %v249, %v245
    %v370 = vpack.c.b16 %v250, %v246
    %v371 = vpack.c.b16 %v251, %v247
    %v372 = vpack.c.b16 %v256, %v252
    %v373 = vpack.c.b16 %v257, %v253
    %v374 = vpack.c.b16 %v258, %v254
    %v375 = vpack.c.b16 %v259, %v255
    %v376 = vpack.c.b16 %v264, %v260
    %v377 = vpack.c.b16 %v265, %v261
    %v378 = vpack.c.b16 %v266, %v262
    %v379 = vpack.c.b16 %v267, %v263
    %v380 = vpack.c.b16 %v272, %v268
    %v381 = vpack.c.b16 %v273, %v269
    %v382 = vpack.c.b16 %v274, %v270
    %v383 = vpack.c.b16 %v275, %v271
    %v384 = vpack.c.b16 %v280, %v276
    %v385 = vpack.c.b16 %v281, %v277
    %v386 = vpack.c.b16 %v282, %v278
    %v387 = vpack.c.b16 %v283, %v279
    %v388 = vpack.c.b16 %v288, %v284
    %v389 = vpack.c.b16 %v289, %v285
    %v390 = vpack.c.b16 %v290, %v286
    %v391 = vpack.c.b16 %v291, %v287
    %v392 = vpack.c.b16 %v296, %v292
    %v393 = vpack.c.b16 %v297, %v293
    %v394 = vpack.c.b16 %v298, %v294
    %v395 = vpack.c.b16 %v299, %v295
    %v396 = vpack.c.b16 %v304, %v300
    %v397 = vpack.c.b16 %v305, %v301
    %v398 = vpack.c.b16 %v306, %v302
    %v399 = vpack.c.b16 %v307, %v303
    %v400 = vpack.c.b16 %v312, %v308
    %v401 = vpack.c.b16 %v313, %v309
    %v402 = vpack.c.b16 %v314, %v310
    %v403 = vpack.c.b16 %v315, %v311
    %v404 = vpack.c.b16 %v320, %v316
    %v405 = vpack.c.b16 %v321, %v317
    %v406 = vpack.c.b16 %v322, %v318
    %v407 = vpack.c.b16 %v323, %v319
    %v408 = vpack.c.b16 %v328, %v324
    %v409 = vpack.c.b16 %v329, %v325
    %v410 = vpack.c.b16 %v330, %v326
    %v411 = vpack.c.b16 %v331, %v327
    %v412 = vpack.c.b16 %v336, %v332
    %v413 = vpack.c.b16 %v337, %v333
    %v414 = vpack.c.b16 %v338, %v334
    %v415 = vpack.c.b16 %v339, %v335
    %v416 = vpack.c.b16 %v344, %v340
    %v417 = vpack.c.b16 %v345, %v341
    %v418 = vpack.c.b16 %v346, %v342
    %v419 = vpack.c.b16 %v347, %v343
    %v420 = vpack.c.b16 %v352, %v348
    %v421 = vpack.c.b16 %v353, %v349
    %v422 = vpack.c.b16 %v354, %v350
    %v423 = vpack.c.b16 %v355, %v351
    %v424 = vpack.c.b16 %v360, %v356
    %v425 = vpack.c.b16 %v361, %v357
    %v426 = vpack.c.b16 %v362, %v358
    %v427 = vpack.c.b16 %v363, %v359
    %492 = vmatpush.bf16.msra.mxu0 %v392
    %493 = vmatpush.bf16.msra.mxu0 %v388
    %494 = vmatpush.bf16.msra.mxu0 %v384
    %495 = vmatpush.bf16.msra.mxu0 %v380
    %496 = vmatpush.bf16.msra.mxu0 %v376
    %497 = vmatpush.bf16.msra.mxu0 %v372
    %498 = vmatpush.bf16.msra.mxu0 %v368
    %499 = vmatpush.bf16.msra.mxu0 %v364
    %500 = vmatmul.bf16.gmra.mxu0 %v92
    %v501 = vpop.f32.mrf.mxu0
    %v502 = vadd.f32 0.0, %v501
    %v503 = vpop.f32.mrf.mxu0
    %v504 = vadd.f32 0.0, %v503
    %505 = vmatmul.bf16.gmra.mxu0 %v94
    %v506 = vpop.f32.mrf.mxu0
    %v507 = vadd.f32 0.0, %v506
    %v508 = vpop.f32.mrf.mxu0
    %v509 = vadd.f32 0.0, %v508
    %510 = vmatmul.bf16.gmra.mxu0 %v96
    %v511 = vpop.f32.mrf.mxu0
    %v512 = vadd.f32 0.0, %v511
    %v513 = vpop.f32.mrf.mxu0
    %v514 = vadd.f32 0.0, %v513
    %515 = vmatmul.bf16.gmra.mxu0 %v98
    %v516 = vpop.f32.mrf.mxu0
    %v517 = vadd.f32 0.0, %v516
    %v518 = vpop.f32.mrf.mxu0
    %v519 = vadd.f32 0.0, %v518
    %520 = vmatmul.bf16.gmra.mxu0 %v100
    %v521 = vpop.f32.mrf.mxu0
    %v522 = vadd.f32 0.0, %v521
    %v523 = vpop.f32.mrf.mxu0
    %v524 = vadd.f32 0.0, %v523
    %525 = vmatmul.bf16.gmra.mxu0 %v102
    %v526 = vpop.f32.mrf.mxu0
    %v527 = vadd.f32 0.0, %v526
    %v528 = vpop.f32.mrf.mxu0
    %v529 = vadd.f32 0.0, %v528
    %530 = vmatmul.bf16.gmra.mxu0 %v104
    %v531 = vpop.f32.mrf.mxu0
    %v532 = vadd.f32 0.0, %v531
    %v533 = vpop.f32.mrf.mxu0
    %v534 = vadd.f32 0.0, %v533
    %535 = vmatmul.bf16.gmra.mxu0 %v106
    %v536 = vpop.f32.mrf.mxu0
    %v537 = vadd.f32 0.0, %v536
    %v538 = vpop.f32.mrf.mxu0
    %v539 = vadd.f32 0.0, %v538
    %540 = vdwg.mxu0
    %541 = vmatpush.bf16.msra.mxu0 %v424
    %542 = vmatpush.bf16.msra.mxu0 %v420
    %543 = vmatpush.bf16.msra.mxu0 %v416
    %544 = vmatpush.bf16.msra.mxu0 %v412
    %545 = vmatpush.bf16.msra.mxu0 %v408
    %546 = vmatpush.bf16.msra.mxu0 %v404
    %547 = vmatpush.bf16.msra.mxu0 %v400
    %548 = vmatpush.bf16.msra.mxu0 %v396
    %549 = vmatmul.bf16.gmra.mxu0 %v93
    %v550 = vpop.f32.mrf.mxu0
    %v551 = vadd.f32 %v502, %v550
    %v552 = vpop.f32.mrf.mxu0
    %v553 = vadd.f32 %v504, %v552
    %554 = vmatmul.bf16.gmra.mxu0 %v95
    %v555 = vpop.f32.mrf.mxu0
    %v556 = vadd.f32 %v507, %v555
    %v557 = vpop.f32.mrf.mxu0
    %v558 = vadd.f32 %v509, %v557
    %559 = vmatmul.bf16.gmra.mxu0 %v97
    %v560 = vpop.f32.mrf.mxu0
    %v561 = vadd.f32 %v512, %v560
    %v562 = vpop.f32.mrf.mxu0
    %v563 = vadd.f32 %v514, %v562
    %564 = vmatmul.bf16.gmra.mxu0 %v99
    %v565 = vpop.f32.mrf.mxu0
    %v566 = vadd.f32 %v517, %v565
    %v567 = vpop.f32.mrf.mxu0
    %v568 = vadd.f32 %v519, %v567
    %569 = vmatmul.bf16.gmra.mxu0 %v101
    %v570 = vpop.f32.mrf.mxu0
    %v571 = vadd.f32 %v522, %v570
    %v572 = vpop.f32.mrf.mxu0
    %v573 = vadd.f32 %v524, %v572
    %574 = vmatmul.bf16.gmra.mxu0 %v103
    %v575 = vpop.f32.mrf.mxu0
    %v576 = vadd.f32 %v527, %v575
    %v577 = vpop.f32.mrf.mxu0
    %v578 = vadd.f32 %v529, %v577
    %579 = vmatmul.bf16.gmra.mxu0 %v105
    %v580 = vpop.f32.mrf.mxu0
    %v581 = vadd.f32 %v532, %v580
    %v582 = vpop.f32.mrf.mxu0
    %v583 = vadd.f32 %v534, %v582
    %584 = vmatmul.bf16.gmra.mxu0 %v107
    %v585 = vpop.f32.mrf.mxu0
    %v586 = vadd.f32 %v537, %v585
    %v587 = vpop.f32.mrf.mxu0
    %v588 = vadd.f32 %v539, %v587
    %589 = vdwg.mxu0
    %590 = vmatpush.bf16.msra.mxu0 %v393
    %591 = vmatpush.bf16.msra.mxu0 %v389
    %592 = vmatpush.bf16.msra.mxu0 %v385
    %593 = vmatpush.bf16.msra.mxu0 %v381
    %594 = vmatpush.bf16.msra.mxu0 %v377
    %595 = vmatpush.bf16.msra.mxu0 %v373
    %596 = vmatpush.bf16.msra.mxu0 %v369
    %597 = vmatpush.bf16.msra.mxu0 %v365
    %598 = vmatmul.bf16.gmra.mxu0 %v92
    %v599 = vpop.f32.mrf.mxu0
    %v600 = vadd.f32 0.0, %v599
    %v601 = vpop.f32.mrf.mxu0
    %v602 = vadd.f32 0.0, %v601
    %603 = vmatmul.bf16.gmra.mxu0 %v94
    %v604 = vpop.f32.mrf.mxu0
    %v605 = vadd.f32 0.0, %v604
    %v606 = vpop.f32.mrf.mxu0
    %v607 = vadd.f32 0.0, %v606
    %608 = vmatmul.bf16.gmra.mxu0 %v96
    %v609 = vpop.f32.mrf.mxu0
    %v610 = vadd.f32 0.0, %v609
    %v611 = vpop.f32.mrf.mxu0
    %v612 = vadd.f32 0.0, %v611
    %613 = vmatmul.bf16.gmra.mxu0 %v98
    %v614 = vpop.f32.mrf.mxu0
    %v615 = vadd.f32 0.0, %v614
    %v616 = vpop.f32.mrf.mxu0
    %v617 = vadd.f32 0.0, %v616
    %618 = vmatmul.bf16.gmra.mxu0 %v100
    %v619 = vpop.f32.mrf.mxu0
    %v620 = vadd.f32 0.0, %v619
    %v621 = vpop.f32.mrf.mxu0
    %v622 = vadd.f32 0.0, %v621
    %623 = vmatmul.bf16.gmra.mxu0 %v102
    %v624 = vpop.f32.mrf.mxu0
    %v625 = vadd.f32 0.0, %v624
    %v626 = vpop.f32.mrf.mxu0
    %v627 = vadd.f32 0.0, %v626
    %628 = vmatmul.bf16.gmra.mxu0 %v104
    %v629 = vpop.f32.mrf.mxu0
    %v630 = vadd.f32 0.0, %v629
    %v631 = vpop.f32.mrf.mxu0
    %v632 = vadd.f32 0.0, %v631
    %633 = vmatmul.bf16.gmra.mxu0 %v106
    %v634 = vpop.f32.mrf.mxu0
    %v635 = vadd.f32 0.0, %v634
    %v636 = vpop.f32.mrf.mxu0
    %v637 = vadd.f32 0.0, %v636
    %638 = vdwg.mxu0
    %639 = vmatpush.bf16.msra.mxu0 %v425
    %640 = vmatpush.bf16.msra.mxu0 %v421
    %641 = vmatpush.bf16.msra.mxu0 %v417
    %642 = vmatpush.bf16.msra.mxu0 %v413
    %643 = vmatpush.bf16.msra.mxu0 %v409
    %644 = vmatpush.bf16.msra.mxu0 %v405
    %645 = vmatpush.bf16.msra.mxu0 %v401
    %646 = vmatpush.bf16.msra.mxu0 %v397
    %647 = vmatmul.bf16.gmra.mxu0 %v93
    %v648 = vpop.f32.mrf.mxu0
    %v649 = vadd.f32 %v600, %v648
    %v650 = vpop.f32.mrf.mxu0
    %v651 = vadd.f32 %v602, %v650
    %652 = vmatmul.bf16.gmra.mxu0 %v95
    %v653 = vpop.f32.mrf.mxu0
    %v654 = vadd.f32 %v605, %v653
    %v655 = vpop.f32.mrf.mxu0
    %v656 = vadd.f32 %v607, %v655
    %657 = vmatmul.bf16.gmra.mxu0 %v97
    %v658 = vpop.f32.mrf.mxu0
    %v659 = vadd.f32 %v610, %v658
    %v660 = vpop.f32.mrf.mxu0
    %v661 = vadd.f32 %v612, %v660
    %662 = vmatmul.bf16.gmra.mxu0 %v99
    %v663 = vpop.f32.mrf.mxu0
    %v664 = vadd.f32 %v615, %v663
    %v665 = vpop.f32.mrf.mxu0
    %v666 = vadd.f32 %v617, %v665
    %667 = vmatmul.bf16.gmra.mxu0 %v101
    %v668 = vpop.f32.mrf.mxu0
    %v669 = vadd.f32 %v620, %v668
    %v670 = vpop.f32.mrf.mxu0
    %v671 = vadd.f32 %v622, %v670
    %672 = vmatmul.bf16.gmra.mxu0 %v103
    %v673 = vpop.f32.mrf.mxu0
    %v674 = vadd.f32 %v625, %v673
    %v675 = vpop.f32.mrf.mxu0
    %v676 = vadd.f32 %v627, %v675
    %677 = vmatmul.bf16.gmra.mxu0 %v105
    %v678 = vpop.f32.mrf.mxu0
    %v679 = vadd.f32 %v630, %v678
    %v680 = vpop.f32.mrf.mxu0
    %v681 = vadd.f32 %v632, %v680
    %682 = vmatmul.bf16.gmra.mxu0 %v107
    %v683 = vpop.f32.mrf.mxu0
    %v684 = vadd.f32 %v635, %v683
    %v685 = vpop.f32.mrf.mxu0
    %v686 = vadd.f32 %v637, %v685
    %687 = vdwg.mxu0
    %688 = vmatpush.bf16.msra.mxu0 %v394
    %689 = vmatpush.bf16.msra.mxu0 %v390
    %690 = vmatpush.bf16.msra.mxu0 %v386
    %691 = vmatpush.bf16.msra.mxu0 %v382
    %692 = vmatpush.bf16.msra.mxu0 %v378
    %693 = vmatpush.bf16.msra.mxu0 %v374
    %694 = vmatpush.bf16.msra.mxu0 %v370
    %695 = vmatpush.bf16.msra.mxu0 %v366
    %696 = vmatmul.bf16.gmra.mxu0 %v92
    %v697 = vpop.f32.mrf.mxu0
    %v698 = vadd.f32 0.0, %v697
    %v699 = vpop.f32.mrf.mxu0
    %v700 = vadd.f32 0.0, %v699
    %701 = vmatmul.bf16.gmra.mxu0 %v94
    %v702 = vpop.f32.mrf.mxu0
    %v703 = vadd.f32 0.0, %v702
    %v704 = vpop.f32.mrf.mxu0
    %v705 = vadd.f32 0.0, %v704
    %706 = vmatmul.bf16.gmra.mxu0 %v96
    %v707 = vpop.f32.mrf.mxu0
    %v708 = vadd.f32 0.0, %v707
    %v709 = vpop.f32.mrf.mxu0
    %v710 = vadd.f32 0.0, %v709
    %711 = vmatmul.bf16.gmra.mxu0 %v98
    %v712 = vpop.f32.mrf.mxu0
    %v713 = vadd.f32 0.0, %v712
    %v714 = vpop.f32.mrf.mxu0
    %v715 = vadd.f32 0.0, %v714
    %716 = vmatmul.bf16.gmra.mxu0 %v100
    %v717 = vpop.f32.mrf.mxu0
    %v718 = vadd.f32 0.0, %v717
    %v719 = vpop.f32.mrf.mxu0
    %v720 = vadd.f32 0.0, %v719
    %721 = vmatmul.bf16.gmra.mxu0 %v102
    %v722 = vpop.f32.mrf.mxu0
    %v723 = vadd.f32 0.0, %v722
    %v724 = vpop.f32.mrf.mxu0
    %v725 = vadd.f32 0.0, %v724
    %726 = vmatmul.bf16.gmra.mxu0 %v104
    %v727 = vpop.f32.mrf.mxu0
    %v728 = vadd.f32 0.0, %v727
    %v729 = vpop.f32.mrf.mxu0
    %v730 = vadd.f32 0.0, %v729
    %731 = vmatmul.bf16.gmra.mxu0 %v106
    %v732 = vpop.f32.mrf.mxu0
    %v733 = vadd.f32 0.0, %v732
    %v734 = vpop.f32.mrf.mxu0
    %v735 = vadd.f32 0.0, %v734
    %736 = vdwg.mxu0
    %737 = vmatpush.bf16.msra.mxu0 %v426
    %738 = vmatpush.bf16.msra.mxu0 %v422
    %739 = vmatpush.bf16.msra.mxu0 %v418
    %740 = vmatpush.bf16.msra.mxu0 %v414
    %741 = vmatpush.bf16.msra.mxu0 %v410
    %742 = vmatpush.bf16.msra.mxu0 %v406
    %743 = vmatpush.bf16.msra.mxu0 %v402
    %744 = vmatpush.bf16.msra.mxu0 %v398
    %745 = vmatmul.bf16.gmra.mxu0 %v93
    %v746 = vpop.f32.mrf.mxu0
    %v747 = vadd.f32 %v698, %v746
    %v748 = vpop.f32.mrf.mxu0
    %v749 = vadd.f32 %v700, %v748
    %750 = vmatmul.bf16.gmra.mxu0 %v95
    %v751 = vpop.f32.mrf.mxu0
    %v752 = vadd.f32 %v703, %v751
    %v753 = vpop.f32.mrf.mxu0
    %v754 = vadd.f32 %v705, %v753
    %755 = vmatmul.bf16.gmra.mxu0 %v97
    %v756 = vpop.f32.mrf.mxu0
    %v757 = vadd.f32 %v708, %v756
    %v758 = vpop.f32.mrf.mxu0
    %v759 = vadd.f32 %v710, %v758
    %760 = vmatmul.bf16.gmra.mxu0 %v99
    %v761 = vpop.f32.mrf.mxu0
    %v762 = vadd.f32 %v713, %v761
    %v763 = vpop.f32.mrf.mxu0
    %v764 = vadd.f32 %v715, %v763
    %765 = vmatmul.bf16.gmra.mxu0 %v101
    %v766 = vpop.f32.mrf.mxu0
    %v767 = vadd.f32 %v718, %v766
    %v768 = vpop.f32.mrf.mxu0
    %v769 = vadd.f32 %v720, %v768
    %770 = vmatmul.bf16.gmra.mxu0 %v103
    %v771 = vpop.f32.mrf.mxu0
    %v772 = vadd.f32 %v723, %v771
    %v773 = vpop.f32.mrf.mxu0
    %v774 = vadd.f32 %v725, %v773
    %775 = vmatmul.bf16.gmra.mxu0 %v105
    %v776 = vpop.f32.mrf.mxu0
    %v777 = vadd.f32 %v728, %v776
    %v778 = vpop.f32.mrf.mxu0
    %v779 = vadd.f32 %v730, %v778
    %780 = vmatmul.bf16.gmra.mxu0 %v107
    %v781 = vpop.f32.mrf.mxu0
    %v782 = vadd.f32 %v733, %v781
    %v783 = vpop.f32.mrf.mxu0
    %v784 = vadd.f32 %v735, %v783
    %785 = vdwg.mxu0
    %786 = vmatpush.bf16.msra.mxu0 %v395
    %787 = vmatpush.bf16.msra.mxu0 %v391
    %788 = vmatpush.bf16.msra.mxu0 %v387
    %789 = vmatpush.bf16.msra.mxu0 %v383
    %790 = vmatpush.bf16.msra.mxu0 %v379
    %791 = vmatpush.bf16.msra.mxu0 %v375
    %792 = vmatpush.bf16.msra.mxu0 %v371
    %793 = vmatpush.bf16.msra.mxu0 %v367
    %794 = vmatmul.bf16.gmra.mxu0 %v92
    %v795 = vpop.f32.mrf.mxu0
    %v796 = vadd.f32 0.0, %v795
    %v797 = vpop.f32.mrf.mxu0
    %v798 = vadd.f32 0.0, %v797
    %799 = vmatmul.bf16.gmra.mxu0 %v94
    %v800 = vpop.f32.mrf.mxu0
    %v801 = vadd.f32 0.0, %v800
    %v802 = vpop.f32.mrf.mxu0
    %v803 = vadd.f32 0.0, %v802
    %804 = vmatmul.bf16.gmra.mxu0 %v96
    %v805 = vpop.f32.mrf.mxu0
    %v806 = vadd.f32 0.0, %v805
    %v807 = vpop.f32.mrf.mxu0
    %v808 = vadd.f32 0.0, %v807
    %809 = vmatmul.bf16.gmra.mxu0 %v98
    %v810 = vpop.f32.mrf.mxu0
    %v811 = vadd.f32 0.0, %v810
    %v812 = vpop.f32.mrf.mxu0
    %v813 = vadd.f32 0.0, %v812
    %814 = vmatmul.bf16.gmra.mxu0 %v100
    %v815 = vpop.f32.mrf.mxu0
    %v816 = vadd.f32 0.0, %v815
    %v817 = vpop.f32.mrf.mxu0
    %v818 = vadd.f32 0.0, %v817
    %819 = vmatmul.bf16.gmra.mxu0 %v102
    %v820 = vpop.f32.mrf.mxu0
    %v821 = vadd.f32 0.0, %v820
    %v822 = vpop.f32.mrf.mxu0
    %v823 = vadd.f32 0.0, %v822
    %824 = vmatmul.bf16.gmra.mxu0 %v104
    %v825 = vpop.f32.mrf.mxu0
    %v826 = vadd.f32 0.0, %v825
    %v827 = vpop.f32.mrf.mxu0
    %v828 = vadd.f32 0.0, %v827
    %829 = vmatmul.bf16.gmra.mxu0 %v106
    %v830 = vpop.f32.mrf.mxu0
    %v831 = vadd.f32 0.0, %v830
    %v832 = vpop.f32.mrf.mxu0
    %v833 = vadd.f32 0.0, %v832
    %834 = vdwg.mxu0
    %835 = vmatpush.bf16.msra.mxu0 %v427
    %836 = vmatpush.bf16.msra.mxu0 %v423
    %837 = vmatpush.bf16.msra.mxu0 %v419
    %838 = vmatpush.bf16.msra.mxu0 %v415
    %839 = vmatpush.bf16.msra.mxu0 %v411
    %840 = vmatpush.bf16.msra.mxu0 %v407
    %841 = vmatpush.bf16.msra.mxu0 %v403
    %842 = vmatpush.bf16.msra.mxu0 %v399
    %843 = vmatmul.bf16.gmra.mxu0 %v93
    %v844 = vpop.f32.mrf.mxu0
    %v845 = vadd.f32 %v796, %v844
    %v846 = vpop.f32.mrf.mxu0
    %v847 = vadd.f32 %v798, %v846
    %848 = vmatmul.bf16.gmra.mxu0 %v95
    %v849 = vpop.f32.mrf.mxu0
    %v850 = vadd.f32 %v801, %v849
    %v851 = vpop.f32.mrf.mxu0
    %v852 = vadd.f32 %v803, %v851
    %853 = vmatmul.bf16.gmra.mxu0 %v97
    %v854 = vpop.f32.mrf.mxu0
    %v855 = vadd.f32 %v806, %v854
    %v856 = vpop.f32.mrf.mxu0
    %v857 = vadd.f32 %v808, %v856
    %858 = vmatmul.bf16.gmra.mxu0 %v99
    %v859 = vpop.f32.mrf.mxu0
    %v860 = vadd.f32 %v811, %v859
    %v861 = vpop.f32.mrf.mxu0
    %v862 = vadd.f32 %v813, %v861
    %863 = vmatmul.bf16.gmra.mxu0 %v101
    %v864 = vpop.f32.mrf.mxu0
    %v865 = vadd.f32 %v816, %v864
    %v866 = vpop.f32.mrf.mxu0
    %v867 = vadd.f32 %v818, %v866
    %868 = vmatmul.bf16.gmra.mxu0 %v103
    %v869 = vpop.f32.mrf.mxu0
    %v870 = vadd.f32 %v821, %v869
    %v871 = vpop.f32.mrf.mxu0
    %v872 = vadd.f32 %v823, %v871
    %873 = vmatmul.bf16.gmra.mxu0 %v105
    %v874 = vpop.f32.mrf.mxu0
    %v875 = vadd.f32 %v826, %v874
    %v876 = vpop.f32.mrf.mxu0
    %v877 = vadd.f32 %v828, %v876
    %878 = vmatmul.bf16.gmra.mxu0 %v107
    %v879 = vpop.f32.mrf.mxu0
    %v880 = vadd.f32 %v831, %v879
    %v881 = vpop.f32.mrf.mxu0
    %v882 = vadd.f32 %v833, %v881
    %883 = vdwg.mxu0
    %v884 = vpack.c.bf16 %v649, %v551
    %v885 = vpack.c.bf16 %v845, %v747
    %v886 = vpack.c.bf16 %v651, %v553
    %v887 = vpack.c.bf16 %v847, %v749
    %v888 = vpack.c.bf16 %v654, %v556
    %v889 = vpack.c.bf16 %v850, %v752
    %v890 = vpack.c.bf16 %v656, %v558
    %v891 = vpack.c.bf16 %v852, %v754
    %v892 = vpack.c.bf16 %v659, %v561
    %v893 = vpack.c.bf16 %v855, %v757
    %v894 = vpack.c.bf16 %v661, %v563
    %v895 = vpack.c.bf16 %v857, %v759
    %v896 = vpack.c.bf16 %v664, %v566
    %v897 = vpack.c.bf16 %v860, %v762
    %v898 = vpack.c.bf16 %v666, %v568
    %v899 = vpack.c.bf16 %v862, %v764
    %v900 = vpack.c.bf16 %v669, %v571
    %v901 = vpack.c.bf16 %v865, %v767
    %v902 = vpack.c.bf16 %v671, %v573
    %v903 = vpack.c.bf16 %v867, %v769
    %v904 = vpack.c.bf16 %v674, %v576
    %v905 = vpack.c.bf16 %v870, %v772
    %v906 = vpack.c.bf16 %v676, %v578
    %v907 = vpack.c.bf16 %v872, %v774
    %v908 = vpack.c.bf16 %v679, %v581
    %v909 = vpack.c.bf16 %v875, %v777
    %v910 = vpack.c.bf16 %v681, %v583
    %v911 = vpack.c.bf16 %v877, %v779
    %v912 = vpack.c.bf16 %v684, %v586
    %v913 = vpack.c.bf16 %v880, %v782
    %v914 = vpack.c.bf16 %v686, %v588
    %v915 = vpack.c.bf16 %v882, %v784
    %v916 = vld [vmem:[%s2] sm:$0xf]
    %918 = vst [vmem:[#allocation1] ss:$9 sm:$0xff] %v916
    %v919 = vld [vmem:[#allocation1] sm:$0xff]
    %v920 = vld [vmem:[#allocation1 + $0x9] sm:$0xff]
    %v921 = vld [vmem:[#allocation1 + $0x12] sm:$0xff]
    %v922 = vld [vmem:[#allocation1 + $0x1b] sm:$0xff]
    %v923 = vpack.i.b16 %v919, %v919
    %v925 = vperm.slane %v923, 0
    %v926 = vpack.i.b16 %v920, %v920
    %v928 = vperm.slane %v926, 0
    %v929 = vpack.i.b16 %v921, %v921
    %v931 = vperm.slane %v929, 0
    %v932 = vpack.i.b16 %v922, %v922
    %v934 = vperm.slane %v932, 0
    %v935 = vunpack.c.l.bf16 %v884
    %v936 = vunpack.c.h.bf16 %v884
    %v937 = vunpack.c.l.bf16 %v885
    %v938 = vunpack.c.h.bf16 %v885
    %v939 = vunpack.c.l.bf16 %v886
    %v940 = vunpack.c.h.bf16 %v886
    %v941 = vunpack.c.l.bf16 %v887
    %v942 = vunpack.c.h.bf16 %v887
    %v943 = vunpack.c.l.bf16 %v888
    %v944 = vunpack.c.h.bf16 %v888
    %v945 = vunpack.c.l.bf16 %v889
    %v946 = vunpack.c.h.bf16 %v889
    %v947 = vunpack.c.l.bf16 %v890
    %v948 = vunpack.c.h.bf16 %v890
    %v949 = vunpack.c.l.bf16 %v891
    %v950 = vunpack.c.h.bf16 %v891
    %v951 = vunpack.c.l.bf16 %v892
    %v952 = vunpack.c.h.bf16 %v892
    %v953 = vunpack.c.l.bf16 %v893
    %v954 = vunpack.c.h.bf16 %v893
    %v955 = vunpack.c.l.bf16 %v894
    %v956 = vunpack.c.h.bf16 %v894
    %v957 = vunpack.c.l.bf16 %v895
    %v958 = vunpack.c.h.bf16 %v895
    %v959 = vunpack.c.l.bf16 %v896
    %v960 = vunpack.c.h.bf16 %v896
    %v961 = vunpack.c.l.bf16 %v897
    %v962 = vunpack.c.h.bf16 %v897
    %v963 = vunpack.c.l.bf16 %v898
    %v964 = vunpack.c.h.bf16 %v898
    %v965 = vunpack.c.l.bf16 %v899
    %v966 = vunpack.c.h.bf16 %v899
    %v967 = vunpack.c.l.bf16 %v900
    %v968 = vunpack.c.h.bf16 %v900
    %v969 = vunpack.c.l.bf16 %v901
    %v970 = vunpack.c.h.bf16 %v901
    %v971 = vunpack.c.l.bf16 %v902
    %v972 = vunpack.c.h.bf16 %v902
    %v973 = vunpack.c.l.bf16 %v903
    %v974 = vunpack.c.h.bf16 %v903
    %v975 = vunpack.c.l.bf16 %v904
    %v976 = vunpack.c.h.bf16 %v904
    %v977 = vunpack.c.l.bf16 %v905
    %v978 = vunpack.c.h.bf16 %v905
    %v979 = vunpack.c.l.bf16 %v906
    %v980 = vunpack.c.h.bf16 %v906
    %v981 = vunpack.c.l.bf16 %v907
    %v982 = vunpack.c.h.bf16 %v907
    %v983 = vunpack.c.l.bf16 %v908
    %v984 = vunpack.c.h.bf16 %v908
    %v985 = vunpack.c.l.bf16 %v909
    %v986 = vunpack.c.h.bf16 %v909
    %v987 = vunpack.c.l.bf16 %v910
    %v988 = vunpack.c.h.bf16 %v910
    %v989 = vunpack.c.l.bf16 %v911
    %v990 = vunpack.c.h.bf16 %v911
    %v991 = vunpack.c.l.bf16 %v912
    %v992 = vunpack.c.h.bf16 %v912
    %v993 = vunpack.c.l.bf16 %v913
    %v994 = vunpack.c.h.bf16 %v913
    %v995 = vunpack.c.l.bf16 %v914
    %v996 = vunpack.c.h.bf16 %v914
    %v997 = vunpack.c.l.bf16 %v915
    %v998 = vunpack.c.h.bf16 %v915
    %v999 = vunpack.c.l.bf16 %v925
    %v1000 = vunpack.c.l.bf16 %v928
    %v1001 = vunpack.c.l.bf16 %v931
    %v1002 = vunpack.c.l.bf16 %v934
    %v1003 = vadd.f32 %v935, %v999
    %v1004 = vadd.f32 %v936, %v1000
    %v1005 = vadd.f32 %v937, %v1001
    %v1006 = vadd.f32 %v938, %v1002
    %v1007 = vadd.f32 %v939, %v999
    %v1008 = vadd.f32 %v940, %v1000
    %v1009 = vadd.f32 %v941, %v1001
    %v1010 = vadd.f32 %v942, %v1002
    %v1011 = vadd.f32 %v943, %v999
    %v1012 = vadd.f32 %v944, %v1000
    %v1013 = vadd.f32 %v945, %v1001
    %v1014 = vadd.f32 %v946, %v1002
    %v1015 = vadd.f32 %v947, %v999
    %v1016 = vadd.f32 %v948, %v1000
    %v1017 = vadd.f32 %v949, %v1001
    %v1018 = vadd.f32 %v950, %v1002
    %v1019 = vadd.f32 %v951, %v999
    %v1020 = vadd.f32 %v952, %v1000
    %v1021 = vadd.f32 %v953, %v1001
    %v1022 = vadd.f32 %v954, %v1002
    %v1023 = vadd.f32 %v955, %v999
    %v1024 = vadd.f32 %v956, %v1000
    %v1025 = vadd.f32 %v957, %v1001
    %v1026 = vadd.f32 %v958, %v1002
    %v1027 = vadd.f32 %v959, %v999
    %v1028 = vadd.f32 %v960, %v1000
    %v1029 = vadd.f32 %v961, %v1001
    %v1030 = vadd.f32 %v962, %v1002
    %v1031 = vadd.f32 %v963, %v999
    %v1032 = vadd.f32 %v964, %v1000
    %v1033 = vadd.f32 %v965, %v1001
    %v1034 = vadd.f32 %v966, %v1002
    %v1035 = vadd.f32 %v967, %v999
    %v1036 = vadd.f32 %v968, %v1000
    %v1037 = vadd.f32 %v969, %v1001
    %v1038 = vadd.f32 %v970, %v1002
    %v1039 = vadd.f32 %v971, %v999
    %v1040 = vadd.f32 %v972, %v1000
    %v1041 = vadd.f32 %v973, %v1001
    %v1042 = vadd.f32 %v974, %v1002
    %v1043 = vadd.f32 %v975, %v999
    %v1044 = vadd.f32 %v976, %v1000
    %v1045 = vadd.f32 %v977, %v1001
    %v1046 = vadd.f32 %v978, %v1002
    %v1047 = vadd.f32 %v979, %v999
    %v1048 = vadd.f32 %v980, %v1000
    %v1049 = vadd.f32 %v981, %v1001
    %v1050 = vadd.f32 %v982, %v1002
    %v1051 = vadd.f32 %v983, %v999
    %v1052 = vadd.f32 %v984, %v1000
    %v1053 = vadd.f32 %v985, %v1001
    %v1054 = vadd.f32 %v986, %v1002
    %v1055 = vadd.f32 %v987, %v999
    %v1056 = vadd.f32 %v988, %v1000
    %v1057 = vadd.f32 %v989, %v1001
    %v1058 = vadd.f32 %v990, %v1002
    %v1059 = vadd.f32 %v991, %v999
    %v1060 = vadd.f32 %v992, %v1000
    %v1061 = vadd.f32 %v993, %v1001
    %v1062 = vadd.f32 %v994, %v1002
    %v1063 = vadd.f32 %v995, %v999
    %v1064 = vadd.f32 %v996, %v1000
    %v1065 = vadd.f32 %v997, %v1001
    %v1066 = vadd.f32 %v998, %v1002
    %v1067 = vpack.c.bf16 %v1004, %v1003
    %v1068 = vpack.c.bf16 %v1006, %v1005
    %v1069 = vpack.c.bf16 %v1008, %v1007
    %v1070 = vpack.c.bf16 %v1010, %v1009
    %v1071 = vpack.c.bf16 %v1012, %v1011
    %v1072 = vpack.c.bf16 %v1014, %v1013
    %v1073 = vpack.c.bf16 %v1016, %v1015
    %v1074 = vpack.c.bf16 %v1018, %v1017
    %v1075 = vpack.c.bf16 %v1020, %v1019
    %v1076 = vpack.c.bf16 %v1022, %v1021
    %v1077 = vpack.c.bf16 %v1024, %v1023
    %v1078 = vpack.c.bf16 %v1026, %v1025
    %v1079 = vpack.c.bf16 %v1028, %v1027
    %v1080 = vpack.c.bf16 %v1030, %v1029
    %v1081 = vpack.c.bf16 %v1032, %v1031
    %v1082 = vpack.c.bf16 %v1034, %v1033
    %v1083 = vpack.c.bf16 %v1036, %v1035
    %v1084 = vpack.c.bf16 %v1038, %v1037
    %v1085 = vpack.c.bf16 %v1040, %v1039
    %v1086 = vpack.c.bf16 %v1042, %v1041
    %v1087 = vpack.c.bf16 %v1044, %v1043
    %v1088 = vpack.c.bf16 %v1046, %v1045
    %v1089 = vpack.c.bf16 %v1048, %v1047
    %v1090 = vpack.c.bf16 %v1050, %v1049
    %v1091 = vpack.c.bf16 %v1052, %v1051
    %v1092 = vpack.c.bf16 %v1054, %v1053
    %v1093 = vpack.c.bf16 %v1056, %v1055
    %v1094 = vpack.c.bf16 %v1058, %v1057
    %v1095 = vpack.c.bf16 %v1060, %v1059
    %v1096 = vpack.c.bf16 %v1062, %v1061
    %v1097 = vpack.c.bf16 %v1064, %v1063
    %v1098 = vpack.c.bf16 %v1066, %v1065
    %v1099 = vunpack.c.l.bf16 %v1067
    %v1100 = vunpack.c.h.bf16 %v1067
    %v1101 = vunpack.c.l.bf16 %v1068
    %v1102 = vunpack.c.h.bf16 %v1068
    %v1103 = vunpack.c.l.bf16 %v1069
    %v1104 = vunpack.c.h.bf16 %v1069
    %v1105 = vunpack.c.l.bf16 %v1070
    %v1106 = vunpack.c.h.bf16 %v1070
    %v1107 = vunpack.c.l.bf16 %v1071
    %v1108 = vunpack.c.h.bf16 %v1071
    %v1109 = vunpack.c.l.bf16 %v1072
    %v1110 = vunpack.c.h.bf16 %v1072
    %v1111 = vunpack.c.l.bf16 %v1073
    %v1112 = vunpack.c.h.bf16 %v1073
    %v1113 = vunpack.c.l.bf16 %v1074
    %v1114 = vunpack.c.h.bf16 %v1074
    %v1115 = vunpack.c.l.bf16 %v1075
    %v1116 = vunpack.c.h.bf16 %v1075
    %v1117 = vunpack.c.l.bf16 %v1076
    %v1118 = vunpack.c.h.bf16 %v1076
    %v1119 = vunpack.c.l.bf16 %v1077
    %v1120 = vunpack.c.h.bf16 %v1077
    %v1121 = vunpack.c.l.bf16 %v1078
    %v1122 = vunpack.c.h.bf16 %v1078
    %v1123 = vunpack.c.l.bf16 %v1079
    %v1124 = vunpack.c.h.bf16 %v1079
    %v1125 = vunpack.c.l.bf16 %v1080
    %v1126 = vunpack.c.h.bf16 %v1080
    %v1127 = vunpack.c.l.bf16 %v1081
    %v1128 = vunpack.c.h.bf16 %v1081
    %v1129 = vunpack.c.l.bf16 %v1082
    %v1130 = vunpack.c.h.bf16 %v1082
    %v1131 = vunpack.c.l.bf16 %v1083
    %v1132 = vunpack.c.h.bf16 %v1083
    %v1133 = vunpack.c.l.bf16 %v1084
    %v1134 = vunpack.c.h.bf16 %v1084
    %v1135 = vunpack.c.l.bf16 %v1085
    %v1136 = vunpack.c.h.bf16 %v1085
    %v1137 = vunpack.c.l.bf16 %v1086
    %v1138 = vunpack.c.h.bf16 %v1086
    %v1139 = vunpack.c.l.bf16 %v1087
    %v1140 = vunpack.c.h.bf16 %v1087
    %v1141 = vunpack.c.l.bf16 %v1088
    %v1142 = vunpack.c.h.bf16 %v1088
    %v1143 = vunpack.c.l.bf16 %v1089
    %v1144 = vunpack.c.h.bf16 %v1089
    %v1145 = vunpack.c.l.bf16 %v1090
    %v1146 = vunpack.c.h.bf16 %v1090
    %v1147 = vunpack.c.l.bf16 %v1091
    %v1148 = vunpack.c.h.bf16 %v1091
    %v1149 = vunpack.c.l.bf16 %v1092
    %v1150 = vunpack.c.h.bf16 %v1092
    %v1151 = vunpack.c.l.bf16 %v1093
    %v1152 = vunpack.c.h.bf16 %v1093
    %v1153 = vunpack.c.l.bf16 %v1094
    %v1154 = vunpack.c.h.bf16 %v1094
    %v1155 = vunpack.c.l.bf16 %v1095
    %v1156 = vunpack.c.h.bf16 %v1095
    %v1157 = vunpack.c.l.bf16 %v1096
    %v1158 = vunpack.c.h.bf16 %v1096
    %v1159 = vunpack.c.l.bf16 %v1097
    %v1160 = vunpack.c.h.bf16 %v1097
    %v1161 = vunpack.c.l.bf16 %v1098
    %v1162 = vunpack.c.h.bf16 %v1098
    %v1163 = vmul.f32 %v1099, 0.20019531
    %v1164 = vmul.f32 %v1100, 0.20019531
    %v1165 = vmul.f32 %v1101, 0.20019531
    %v1166 = vmul.f32 %v1102, 0.20019531
    %v1167 = vmul.f32 %v1103, 0.20019531
    %v1168 = vmul.f32 %v1104, 0.20019531
    %v1169 = vmul.f32 %v1105, 0.20019531
    %v1170 = vmul.f32 %v1106, 0.20019531
    %v1171 = vmul.f32 %v1107, 0.20019531
    %v1172 = vmul.f32 %v1108, 0.20019531
    %v1173 = vmul.f32 %v1109, 0.20019531
    %v1174 = vmul.f32 %v1110, 0.20019531
    %v1175 = vmul.f32 %v1111, 0.20019531
    %v1176 = vmul.f32 %v1112, 0.20019531
    %v1177 = vmul.f32 %v1113, 0.20019531
    %v1178 = vmul.f32 %v1114, 0.20019531
    %v1179 = vmul.f32 %v1115, 0.20019531
    %v1180 = vmul.f32 %v1116, 0.20019531
    %v1181 = vmul.f32 %v1117, 0.20019531
    %v1182 = vmul.f32 %v1118, 0.20019531
    %v1183 = vmul.f32 %v1119, 0.20019531
    %v1184 = vmul.f32 %v1120, 0.20019531
    %v1185 = vmul.f32 %v1121, 0.20019531
    %v1186 = vmul.f32 %v1122, 0.20019531
    %v1187 = vmul.f32 %v1123, 0.20019531
    %v1188 = vmul.f32 %v1124, 0.20019531
    %v1189 = vmul.f32 %v1125, 0.20019531
    %v1190 = vmul.f32 %v1126, 0.20019531
    %v1191 = vmul.f32 %v1127, 0.20019531
    %v1192 = vmul.f32 %v1128, 0.20019531
    %v1193 = vmul.f32 %v1129, 0.20019531
    %v1194 = vmul.f32 %v1130, 0.20019531
    %v1195 = vmul.f32 %v1131, 0.20019531
    %v1196 = vmul.f32 %v1132, 0.20019531
    %v1197 = vmul.f32 %v1133, 0.20019531
    %v1198 = vmul.f32 %v1134, 0.20019531
    %v1199 = vmul.f32 %v1135, 0.20019531
    %v1200 = vmul.f32 %v1136, 0.20019531
    %v1201 = vmul.f32 %v1137, 0.20019531
    %v1202 = vmul.f32 %v1138, 0.20019531
    %v1203 = vmul.f32 %v1139, 0.20019531
    %v1204 = vmul.f32 %v1140, 0.20019531
    %v1205 = vmul.f32 %v1141, 0.20019531
    %v1206 = vmul.f32 %v1142, 0.20019531
    %v1207 = vmul.f32 %v1143, 0.20019531
    %v1208 = vmul.f32 %v1144, 0.20019531
    %v1209 = vmul.f32 %v1145, 0.20019531
    %v1210 = vmul.f32 %v1146, 0.20019531
    %v1211 = vmul.f32 %v1147, 0.20019531
    %v1212 = vmul.f32 %v1148, 0.20019531
    %v1213 = vmul.f32 %v1149, 0.20019531
    %v1214 = vmul.f32 %v1150, 0.20019531
    %v1215 = vmul.f32 %v1151, 0.20019531
    %v1216 = vmul.f32 %v1152, 0.20019531
    %v1217 = vmul.f32 %v1153, 0.20019531
    %v1218 = vmul.f32 %v1154, 0.20019531
    %v1219 = vmul.f32 %v1155, 0.20019531
    %v1220 = vmul.f32 %v1156, 0.20019531
    %v1221 = vmul.f32 %v1157, 0.20019531
    %v1222 = vmul.f32 %v1158, 0.20019531
    %v1223 = vmul.f32 %v1159, 0.20019531
    %v1224 = vmul.f32 %v1160, 0.20019531
    %v1225 = vmul.f32 %v1161, 0.20019531
    %v1226 = vmul.f32 %v1162, 0.20019531
    %v1227 = vpack.c.bf16 %v1164, %v1163
    %v1228 = vpack.c.bf16 %v1166, %v1165
    %v1229 = vpack.c.bf16 %v1168, %v1167
    %v1230 = vpack.c.bf16 %v1170, %v1169
    %v1231 = vpack.c.bf16 %v1172, %v1171
    %v1232 = vpack.c.bf16 %v1174, %v1173
    %v1233 = vpack.c.bf16 %v1176, %v1175
    %v1234 = vpack.c.bf16 %v1178, %v1177
    %v1235 = vpack.c.bf16 %v1180, %v1179
    %v1236 = vpack.c.bf16 %v1182, %v1181
    %v1237 = vpack.c.bf16 %v1184, %v1183
    %v1238 = vpack.c.bf16 %v1186, %v1185
    %v1239 = vpack.c.bf16 %v1188, %v1187
    %v1240 = vpack.c.bf16 %v1190, %v1189
    %v1241 = vpack.c.bf16 %v1192, %v1191
    %v1242 = vpack.c.bf16 %v1194, %v1193
    %v1243 = vpack.c.bf16 %v1196, %v1195
    %v1244 = vpack.c.bf16 %v1198, %v1197
    %v1245 = vpack.c.bf16 %v1200, %v1199
    %v1246 = vpack.c.bf16 %v1202, %v1201
    %v1247 = vpack.c.bf16 %v1204, %v1203
    %v1248 = vpack.c.bf16 %v1206, %v1205
    %v1249 = vpack.c.bf16 %v1208, %v1207
    %v1250 = vpack.c.bf16 %v1210, %v1209
    %v1251 = vpack.c.bf16 %v1212, %v1211
    %v1252 = vpack.c.bf16 %v1214, %v1213
    %v1253 = vpack.c.bf16 %v1216, %v1215
    %v1254 = vpack.c.bf16 %v1218, %v1217
    %v1255 = vpack.c.bf16 %v1220, %v1219
    %v1256 = vpack.c.bf16 %v1222, %v1221
    %v1257 = vpack.c.bf16 %v1224, %v1223
    %v1258 = vpack.c.bf16 %v1226, %v1225
    %v1259 = vunpack.c.l.bf16 %v1227
    %v1260 = vunpack.c.h.bf16 %v1227
    %v1261 = vunpack.c.l.bf16 %v1228
    %v1262 = vunpack.c.h.bf16 %v1228
    %v1263 = vunpack.c.l.bf16 %v1229
    %v1264 = vunpack.c.h.bf16 %v1229
    %v1265 = vunpack.c.l.bf16 %v1230
    %v1266 = vunpack.c.h.bf16 %v1230
    %v1267 = vunpack.c.l.bf16 %v1231
    %v1268 = vunpack.c.h.bf16 %v1231
    %v1269 = vunpack.c.l.bf16 %v1232
    %v1270 = vunpack.c.h.bf16 %v1232
    %v1271 = vunpack.c.l.bf16 %v1233
    %v1272 = vunpack.c.h.bf16 %v1233
    %v1273 = vunpack.c.l.bf16 %v1234
    %v1274 = vunpack.c.h.bf16 %v1234
    %v1275 = vunpack.c.l.bf16 %v1235
    %v1276 = vunpack.c.h.bf16 %v1235
    %v1277 = vunpack.c.l.bf16 %v1236
    %v1278 = vunpack.c.h.bf16 %v1236
    %v1279 = vunpack.c.l.bf16 %v1237
    %v1280 = vunpack.c.h.bf16 %v1237
    %v1281 = vunpack.c.l.bf16 %v1238
    %v1282 = vunpack.c.h.bf16 %v1238
    %v1283 = vunpack.c.l.bf16 %v1239
    %v1284 = vunpack.c.h.bf16 %v1239
    %v1285 = vunpack.c.l.bf16 %v1240
    %v1286 = vunpack.c.h.bf16 %v1240
    %v1287 = vunpack.c.l.bf16 %v1241
    %v1288 = vunpack.c.h.bf16 %v1241
    %v1289 = vunpack.c.l.bf16 %v1242
    %v1290 = vunpack.c.h.bf16 %v1242
    %v1291 = vunpack.c.l.bf16 %v1243
    %v1292 = vunpack.c.h.bf16 %v1243
    %v1293 = vunpack.c.l.bf16 %v1244
    %v1294 = vunpack.c.h.bf16 %v1244
    %v1295 = vunpack.c.l.bf16 %v1245
    %v1296 = vunpack.c.h.bf16 %v1245
    %v1297 = vunpack.c.l.bf16 %v1246
    %v1298 = vunpack.c.h.bf16 %v1246
    %v1299 = vunpack.c.l.bf16 %v1247
    %v1300 = vunpack.c.h.bf16 %v1247
    %v1301 = vunpack.c.l.bf16 %v1248
    %v1302 = vunpack.c.h.bf16 %v1248
    %v1303 = vunpack.c.l.bf16 %v1249
    %v1304 = vunpack.c.h.bf16 %v1249
    %v1305 = vunpack.c.l.bf16 %v1250
    %v1306 = vunpack.c.h.bf16 %v1250
    %v1307 = vunpack.c.l.bf16 %v1251
    %v1308 = vunpack.c.h.bf16 %v1251
    %v1309 = vunpack.c.l.bf16 %v1252
    %v1310 = vunpack.c.h.bf16 %v1252
    %v1311 = vunpack.c.l.bf16 %v1253
    %v1312 = vunpack.c.h.bf16 %v1253
    %v1313 = vunpack.c.l.bf16 %v1254
    %v1314 = vunpack.c.h.bf16 %v1254
    %v1315 = vunpack.c.l.bf16 %v1255
    %v1316 = vunpack.c.h.bf16 %v1255
    %v1317 = vunpack.c.l.bf16 %v1256
    %v1318 = vunpack.c.h.bf16 %v1256
    %v1319 = vunpack.c.l.bf16 %v1257
    %v1320 = vunpack.c.h.bf16 %v1257
    %v1321 = vunpack.c.l.bf16 %v1258
    %v1322 = vunpack.c.h.bf16 %v1258
    %v1323 = vmax.f32 %v1099, %v1259
    %v1324 = vmax.f32 %v1100, %v1260
    %v1325 = vmax.f32 %v1101, %v1261
    %v1326 = vmax.f32 %v1102, %v1262
    %v1327 = vmax.f32 %v1103, %v1263
    %v1328 = vmax.f32 %v1104, %v1264
    %v1329 = vmax.f32 %v1105, %v1265
    %v1330 = vmax.f32 %v1106, %v1266
    %v1331 = vmax.f32 %v1107, %v1267
    %v1332 = vmax.f32 %v1108, %v1268
    %v1333 = vmax.f32 %v1109, %v1269
    %v1334 = vmax.f32 %v1110, %v1270
    %v1335 = vmax.f32 %v1111, %v1271
    %v1336 = vmax.f32 %v1112, %v1272
    %v1337 = vmax.f32 %v1113, %v1273
    %v1338 = vmax.f32 %v1114, %v1274
    %v1339 = vmax.f32 %v1115, %v1275
    %v1340 = vmax.f32 %v1116, %v1276
    %v1341 = vmax.f32 %v1117, %v1277
    %v1342 = vmax.f32 %v1118, %v1278
    %v1343 = vmax.f32 %v1119, %v1279
    %v1344 = vmax.f32 %v1120, %v1280
    %v1345 = vmax.f32 %v1121, %v1281
    %v1346 = vmax.f32 %v1122, %v1282
    %v1347 = vmax.f32 %v1123, %v1283
    %v1348 = vmax.f32 %v1124, %v1284
    %v1349 = vmax.f32 %v1125, %v1285
    %v1350 = vmax.f32 %v1126, %v1286
    %v1351 = vmax.f32 %v1127, %v1287
    %v1352 = vmax.f32 %v1128, %v1288
    %v1353 = vmax.f32 %v1129, %v1289
    %v1354 = vmax.f32 %v1130, %v1290
    %v1355 = vmax.f32 %v1131, %v1291
    %v1356 = vmax.f32 %v1132, %v1292
    %v1357 = vmax.f32 %v1133, %v1293
    %v1358 = vmax.f32 %v1134, %v1294
    %v1359 = vmax.f32 %v1135, %v1295
    %v1360 = vmax.f32 %v1136, %v1296
    %v1361 = vmax.f32 %v1137, %v1297
    %v1362 = vmax.f32 %v1138, %v1298
    %v1363 = vmax.f32 %v1139, %v1299
    %v1364 = vmax.f32 %v1140, %v1300
    %v1365 = vmax.f32 %v1141, %v1301
    %v1366 = vmax.f32 %v1142, %v1302
    %v1367 = vmax.f32 %v1143, %v1303
    %v1368 = vmax.f32 %v1144, %v1304
    %v1369 = vmax.f32 %v1145, %v1305
    %v1370 = vmax.f32 %v1146, %v1306
    %v1371 = vmax.f32 %v1147, %v1307
    %v1372 = vmax.f32 %v1148, %v1308
    %v1373 = vmax.f32 %v1149, %v1309
    %v1374 = vmax.f32 %v1150, %v1310
    %v1375 = vmax.f32 %v1151, %v1311
    %v1376 = vmax.f32 %v1152, %v1312
    %v1377 = vmax.f32 %v1153, %v1313
    %v1378 = vmax.f32 %v1154, %v1314
    %v1379 = vmax.f32 %v1155, %v1315
    %v1380 = vmax.f32 %v1156, %v1316
    %v1381 = vmax.f32 %v1157, %v1317
    %v1382 = vmax.f32 %v1158, %v1318
    %v1383 = vmax.f32 %v1159, %v1319
    %v1384 = vmax.f32 %v1160, %v1320
    %v1385 = vmax.f32 %v1161, %v1321
    %v1386 = vmax.f32 %v1162, %v1322
    %v1387 = vpack.c.bf16 %v1327, %v1323
    %v1388 = vpack.c.bf16 %v1328, %v1324
    %v1389 = vpack.c.bf16 %v1329, %v1325
    %v1390 = vpack.c.bf16 %v1330, %v1326
    %v1391 = vpack.c.bf16 %v1335, %v1331
    %v1392 = vpack.c.bf16 %v1336, %v1332
    %v1393 = vpack.c.bf16 %v1337, %v1333
    %v1394 = vpack.c.bf16 %v1338, %v1334
    %v1395 = vpack.c.bf16 %v1343, %v1339
    %v1396 = vpack.c.bf16 %v1344, %v1340
    %v1397 = vpack.c.bf16 %v1345, %v1341
    %v1398 = vpack.c.bf16 %v1346, %v1342
    %v1399 = vpack.c.bf16 %v1351, %v1347
    %v1400 = vpack.c.bf16 %v1352, %v1348
    %v1401 = vpack.c.bf16 %v1353, %v1349
    %v1402 = vpack.c.bf16 %v1354, %v1350
    %v1403 = vpack.c.bf16 %v1359, %v1355
    %v1404 = vpack.c.bf16 %v1360, %v1356
    %v1405 = vpack.c.bf16 %v1361, %v1357
    %v1406 = vpack.c.bf16 %v1362, %v1358
    %v1407 = vpack.c.bf16 %v1367, %v1363
    %v1408 = vpack.c.bf16 %v1368, %v1364
    %v1409 = vpack.c.bf16 %v1369, %v1365
    %v1410 = vpack.c.bf16 %v1370, %v1366
    %v1411 = vpack.c.bf16 %v1375, %v1371
    %v1412 = vpack.c.bf16 %v1376, %v1372
    %v1413 = vpack.c.bf16 %v1377, %v1373
    %v1414 = vpack.c.bf16 %v1378, %v1374
    %v1415 = vpack.c.bf16 %v1383, %v1379
    %v1416 = vpack.c.bf16 %v1384, %v1380
    %v1417 = vpack.c.bf16 %v1385, %v1381
    %v1418 = vpack.c.bf16 %v1386, %v1382
    %v1419 = vld [vmem:[#allocation5] sm:$0xff]
    %v1420 = vld [vmem:[#allocation5 + $0x8] sm:$0xff]
    %v1421 = vld [vmem:[#allocation5 + $0x10] sm:$0xff]
    %v1422 = vld [vmem:[#allocation5 + $0x18] sm:$0xff]
    %v1423 = vld [vmem:[#allocation5 + $0x20] sm:$0xff]
    %v1424 = vld [vmem:[#allocation5 + $0x28] sm:$0xff]
    %v1425 = vld [vmem:[#allocation5 + $0x30] sm:$0xff]
    %v1426 = vld [vmem:[#allocation5 + $0x38] sm:$0xff]
    %v1427 = vld [vmem:[#allocation5 + $0x40] sm:$0xff]
    %v1428 = vld [vmem:[#allocation5 + $0x48] sm:$0xff]
    %v1429 = vld [vmem:[#allocation5 + $0x50] sm:$0xff]
    %v1430 = vld [vmem:[#allocation5 + $0x58] sm:$0xff]
    %v1431 = vld [vmem:[#allocation5 + $0x60] sm:$0xff]
    %v1432 = vld [vmem:[#allocation5 + $0x68] sm:$0xff]
    %v1433 = vld [vmem:[#allocation5 + $0x70] sm:$0xff]
    %v1434 = vld [vmem:[#allocation5 + $0x78] sm:$0xff]
    %v1435 = vld [vmem:[#allocation5 + $0x80] sm:$0xff]
    %v1436 = vld [vmem:[#allocation5 + $0x88] sm:$0xff]
    %v1437 = vld [vmem:[#allocation5 + $0x90] sm:$0xff]
    %v1438 = vld [vmem:[#allocation5 + $0x98] sm:$0xff]
    %v1439 = vld [vmem:[#allocation5 + $0xa0] sm:$0xff]
    %v1440 = vld [vmem:[#allocation5 + $0xa8] sm:$0xff]
    %v1441 = vld [vmem:[#allocation5 + $0xb0] sm:$0xff]
    %v1442 = vld [vmem:[#allocation5 + $0xb8] sm:$0xff]
    %v1443 = vld [vmem:[#allocation5 + $0xc0] sm:$0xff]
    %v1444 = vld [vmem:[#allocation5 + $0xc8] sm:$0xff]
    %v1445 = vld [vmem:[#allocation5 + $0xd0] sm:$0xff]
    %v1446 = vld [vmem:[#allocation5 + $0xd8] sm:$0xff]
    %v1447 = vld [vmem:[#allocation5 + $0xe0] sm:$0xff]
    %v1448 = vld [vmem:[#allocation5 + $0xe8] sm:$0xff]
    %v1449 = vld [vmem:[#allocation5 + $0xf0] sm:$0xff]
    %v1450 = vld [vmem:[#allocation5 + $0xf8] sm:$0xff]
    %v1451 = vld [vmem:[#allocation5 + $0x100] sm:$0xff]
    %v1452 = vld [vmem:[#allocation5 + $0x108] sm:$0xff]
    %v1453 = vld [vmem:[#allocation5 + $0x110] sm:$0xff]
    %v1454 = vld [vmem:[#allocation5 + $0x118] sm:$0xff]
    %v1455 = vld [vmem:[#allocation5 + $0x120] sm:$0xff]
    %v1456 = vld [vmem:[#allocation5 + $0x128] sm:$0xff]
    %v1457 = vld [vmem:[#allocation5 + $0x130] sm:$0xff]
    %v1458 = vld [vmem:[#allocation5 + $0x138] sm:$0xff]
    %v1459 = vld [vmem:[#allocation5 + $0x140] sm:$0xff]
    %v1460 = vld [vmem:[#allocation5 + $0x148] sm:$0xff]
    %v1461 = vld [vmem:[#allocation5 + $0x150] sm:$0xff]
    %v1462 = vld [vmem:[#allocation5 + $0x158] sm:$0xff]
    %v1463 = vld [vmem:[#allocation5 + $0x160] sm:$0xff]
    %v1464 = vld [vmem:[#allocation5 + $0x168] sm:$0xff]
    %v1465 = vld [vmem:[#allocation5 + $0x170] sm:$0xff]
    %v1466 = vld [vmem:[#allocation5 + $0x178] sm:$0xff]
    %v1467 = vld [vmem:[#allocation5 + $0x180] sm:$0xff]
    %v1468 = vld [vmem:[#allocation5 + $0x188] sm:$0xff]
    %v1469 = vld [vmem:[#allocation5 + $0x190] sm:$0xff]
    %v1470 = vld [vmem:[#allocation5 + $0x198] sm:$0xff]
    %v1471 = vld [vmem:[#allocation5 + $0x1a0] sm:$0xff]
    %v1472 = vld [vmem:[#allocation5 + $0x1a8] sm:$0xff]
    %v1473 = vld [vmem:[#allocation5 + $0x1b0] sm:$0xff]
    %v1474 = vld [vmem:[#allocation5 + $0x1b8] sm:$0xff]
    %v1475 = vld [vmem:[#allocation5 + $0x1c0] sm:$0xff]
    %v1476 = vld [vmem:[#allocation5 + $0x1c8] sm:$0xff]
    %v1477 = vld [vmem:[#allocation5 + $0x1d0] sm:$0xff]
    %v1478 = vld [vmem:[#allocation5 + $0x1d8] sm:$0xff]
    %v1479 = vld [vmem:[#allocation5 + $0x1e0] sm:$0xff]
    %v1480 = vld [vmem:[#allocation5 + $0x1e8] sm:$0xff]
    %v1481 = vld [vmem:[#allocation5 + $0x1f0] sm:$0xff]
    %v1482 = vld [vmem:[#allocation5 + $0x1f8] sm:$0xff]
    %v1547 = vunpack.c.l.b16 %v1419
    %v1548 = vunpack.c.h.b16 %v1419
    %v1549 = vunpack.c.l.b16 %v1420
    %v1550 = vunpack.c.h.b16 %v1420
    %v1551 = vunpack.c.l.b16 %v1421
    %v1552 = vunpack.c.h.b16 %v1421
    %v1553 = vunpack.c.l.b16 %v1422
    %v1554 = vunpack.c.h.b16 %v1422
    %v1555 = vunpack.c.l.b16 %v1423
    %v1556 = vunpack.c.h.b16 %v1423
    %v1557 = vunpack.c.l.b16 %v1424
    %v1558 = vunpack.c.h.b16 %v1424
    %v1559 = vunpack.c.l.b16 %v1425
    %v1560 = vunpack.c.h.b16 %v1425
    %v1561 = vunpack.c.l.b16 %v1426
    %v1562 = vunpack.c.h.b16 %v1426
    %v1563 = vunpack.c.l.b16 %v1427
    %v1564 = vunpack.c.h.b16 %v1427
    %v1565 = vunpack.c.l.b16 %v1428
    %v1566 = vunpack.c.h.b16 %v1428
    %v1567 = vunpack.c.l.b16 %v1429
    %v1568 = vunpack.c.h.b16 %v1429
    %v1569 = vunpack.c.l.b16 %v1430
    %v1570 = vunpack.c.h.b16 %v1430
    %v1571 = vunpack.c.l.b16 %v1431
    %v1572 = vunpack.c.h.b16 %v1431
    %v1573 = vunpack.c.l.b16 %v1432
    %v1574 = vunpack.c.h.b16 %v1432
    %v1575 = vunpack.c.l.b16 %v1433
    %v1576 = vunpack.c.h.b16 %v1433
    %v1577 = vunpack.c.l.b16 %v1434
    %v1578 = vunpack.c.h.b16 %v1434
    %v1579 = vunpack.c.l.b16 %v1435
    %v1580 = vunpack.c.h.b16 %v1435
    %v1581 = vunpack.c.l.b16 %v1436
    %v1582 = vunpack.c.h.b16 %v1436
    %v1583 = vunpack.c.l.b16 %v1437
    %v1584 = vunpack.c.h.b16 %v1437
    %v1585 = vunpack.c.l.b16 %v1438
    %v1586 = vunpack.c.h.b16 %v1438
    %v1587 = vunpack.c.l.b16 %v1439
    %v1588 = vunpack.c.h.b16 %v1439
    %v1589 = vunpack.c.l.b16 %v1440
    %v1590 = vunpack.c.h.b16 %v1440
    %v1591 = vunpack.c.l.b16 %v1441
    %v1592 = vunpack.c.h.b16 %v1441
    %v1593 = vunpack.c.l.b16 %v1442
    %v1594 = vunpack.c.h.b16 %v1442
    %v1595 = vunpack.c.l.b16 %v1443
    %v1596 = vunpack.c.h.b16 %v1443
    %v1597 = vunpack.c.l.b16 %v1444
    %v1598 = vunpack.c.h.b16 %v1444
    %v1599 = vunpack.c.l.b16 %v1445
    %v1600 = vunpack.c.h.b16 %v1445
    %v1601 = vunpack.c.l.b16 %v1446
    %v1602 = vunpack.c.h.b16 %v1446
    %v1603 = vunpack.c.l.b16 %v1447
    %v1604 = vunpack.c.h.b16 %v1447
    %v1605 = vunpack.c.l.b16 %v1448
    %v1606 = vunpack.c.h.b16 %v1448
    %v1607 = vunpack.c.l.b16 %v1449
    %v1608 = vunpack.c.h.b16 %v1449
    %v1609 = vunpack.c.l.b16 %v1450
    %v1610 = vunpack.c.h.b16 %v1450
    %v1611 = vunpack.c.l.b16 %v1451
    %v1612 = vunpack.c.h.b16 %v1451
    %v1613 = vunpack.c.l.b16 %v1452
    %v1614 = vunpack.c.h.b16 %v1452
    %v1615 = vunpack.c.l.b16 %v1453
    %v1616 = vunpack.c.h.b16 %v1453
    %v1617 = vunpack.c.l.b16 %v1454
    %v1618 = vunpack.c.h.b16 %v1454
    %v1619 = vunpack.c.l.b16 %v1455
    %v1620 = vunpack.c.h.b16 %v1455
    %v1621 = vunpack.c.l.b16 %v1456
    %v1622 = vunpack.c.h.b16 %v1456
    %v1623 = vunpack.c.l.b16 %v1457
    %v1624 = vunpack.c.h.b16 %v1457
    %v1625 = vunpack.c.l.b16 %v1458
    %v1626 = vunpack.c.h.b16 %v1458
    %v1627 = vunpack.c.l.b16 %v1459
    %v1628 = vunpack.c.h.b16 %v1459
    %v1629 = vunpack.c.l.b16 %v1460
    %v1630 = vunpack.c.h.b16 %v1460
    %v1631 = vunpack.c.l.b16 %v1461
    %v1632 = vunpack.c.h.b16 %v1461
    %v1633 = vunpack.c.l.b16 %v1462
    %v1634 = vunpack.c.h.b16 %v1462
    %v1635 = vunpack.c.l.b16 %v1463
    %v1636 = vunpack.c.h.b16 %v1463
    %v1637 = vunpack.c.l.b16 %v1464
    %v1638 = vunpack.c.h.b16 %v1464
    %v1639 = vunpack.c.l.b16 %v1465
    %v1640 = vunpack.c.h.b16 %v1465
    %v1641 = vunpack.c.l.b16 %v1466
    %v1642 = vunpack.c.h.b16 %v1466
    %v1643 = vunpack.c.l.b16 %v1467
    %v1644 = vunpack.c.h.b16 %v1467
    %v1645 = vunpack.c.l.b16 %v1468
    %v1646 = vunpack.c.h.b16 %v1468
    %v1647 = vunpack.c.l.b16 %v1469
    %v1648 = vunpack.c.h.b16 %v1469
    %v1649 = vunpack.c.l.b16 %v1470
    %v1650 = vunpack.c.h.b16 %v1470
    %v1651 = vunpack.c.l.b16 %v1471
    %v1652 = vunpack.c.h.b16 %v1471
    %v1653 = vunpack.c.l.b16 %v1472
    %v1654 = vunpack.c.h.b16 %v1472
    %v1655 = vunpack.c.l.b16 %v1473
    %v1656 = vunpack.c.h.b16 %v1473
    %v1657 = vunpack.c.l.b16 %v1474
    %v1658 = vunpack.c.h.b16 %v1474
    %v1659 = vunpack.c.l.b16 %v1475
    %v1660 = vunpack.c.h.b16 %v1475
    %v1661 = vunpack.c.l.b16 %v1476
    %v1662 = vunpack.c.h.b16 %v1476
    %v1663 = vunpack.c.l.b16 %v1477
    %v1664 = vunpack.c.h.b16 %v1477
    %v1665 = vunpack.c.l.b16 %v1478
    %v1666 = vunpack.c.h.b16 %v1478
    %v1667 = vunpack.c.l.b16 %v1479
    %v1668 = vunpack.c.h.b16 %v1479
    %v1669 = vunpack.c.l.b16 %v1480
    %v1670 = vunpack.c.h.b16 %v1480
    %v1671 = vunpack.c.l.b16 %v1481
    %v1672 = vunpack.c.h.b16 %v1481
    %v1673 = vunpack.c.l.b16 %v1482
    %v1674 = vunpack.c.h.b16 %v1482
    %v1675 = vpack.c.b16 %v1549, %v1547
    %v1676 = vpack.c.b16 %v1550, %v1548
    %v1677 = vpack.c.b16 %v1553, %v1551
    %v1678 = vpack.c.b16 %v1554, %v1552
    %v1679 = vpack.c.b16 %v1557, %v1555
    %v1680 = vpack.c.b16 %v1558, %v1556
    %v1681 = vpack.c.b16 %v1561, %v1559
    %v1682 = vpack.c.b16 %v1562, %v1560
    %v1683 = vpack.c.b16 %v1565, %v1563
    %v1684 = vpack.c.b16 %v1566, %v1564
    %v1685 = vpack.c.b16 %v1569, %v1567
    %v1686 = vpack.c.b16 %v1570, %v1568
    %v1687 = vpack.c.b16 %v1573, %v1571
    %v1688 = vpack.c.b16 %v1574, %v1572
    %v1689 = vpack.c.b16 %v1577, %v1575
    %v1690 = vpack.c.b16 %v1578, %v1576
    %v1691 = vpack.c.b16 %v1581, %v1579
    %v1692 = vpack.c.b16 %v1582, %v1580
    %v1693 = vpack.c.b16 %v1585, %v1583
    %v1694 = vpack.c.b16 %v1586, %v1584
    %v1695 = vpack.c.b16 %v1589, %v1587
    %v1696 = vpack.c.b16 %v1590, %v1588
    %v1697 = vpack.c.b16 %v1593, %v1591
    %v1698 = vpack.c.b16 %v1594, %v1592
    %v1699 = vpack.c.b16 %v1597, %v1595
    %v1700 = vpack.c.b16 %v1598, %v1596
    %v1701 = vpack.c.b16 %v1601, %v1599
    %v1702 = vpack.c.b16 %v1602, %v1600
    %v1703 = vpack.c.b16 %v1605, %v1603
    %v1704 = vpack.c.b16 %v1606, %v1604
    %v1705 = vpack.c.b16 %v1609, %v1607
    %v1706 = vpack.c.b16 %v1610, %v1608
    %v1707 = vpack.c.b16 %v1613, %v1611
    %v1708 = vpack.c.b16 %v1614, %v1612
    %v1709 = vpack.c.b16 %v1617, %v1615
    %v1710 = vpack.c.b16 %v1618, %v1616
    %v1711 = vpack.c.b16 %v1621, %v1619
    %v1712 = vpack.c.b16 %v1622, %v1620
    %v1713 = vpack.c.b16 %v1625, %v1623
    %v1714 = vpack.c.b16 %v1626, %v1624
    %v1715 = vpack.c.b16 %v1629, %v1627
    %v1716 = vpack.c.b16 %v1630, %v1628
    %v1717 = vpack.c.b16 %v1633, %v1631
    %v1718 = vpack.c.b16 %v1634, %v1632
    %v1719 = vpack.c.b16 %v1637, %v1635
    %v1720 = vpack.c.b16 %v1638, %v1636
    %v1721 = vpack.c.b16 %v1641, %v1639
    %v1722 = vpack.c.b16 %v1642, %v1640
    %v1723 = vpack.c.b16 %v1645, %v1643
    %v1724 = vpack.c.b16 %v1646, %v1644
    %v1725 = vpack.c.b16 %v1649, %v1647
    %v1726 = vpack.c.b16 %v1650, %v1648
    %v1727 = vpack.c.b16 %v1653, %v1651
    %v1728 = vpack.c.b16 %v1654, %v1652
    %v1729 = vpack.c.b16 %v1657, %v1655
    %v1730 = vpack.c.b16 %v1658, %v1656
    %v1731 = vpack.c.b16 %v1661, %v1659
    %v1732 = vpack.c.b16 %v1662, %v1660
    %v1733 = vpack.c.b16 %v1665, %v1663
    %v1734 = vpack.c.b16 %v1666, %v1664
    %v1735 = vpack.c.b16 %v1669, %v1667
    %v1736 = vpack.c.b16 %v1670, %v1668
    %v1737 = vpack.c.b16 %v1673, %v1671
    %v1738 = vpack.c.b16 %v1674, %v1672
    %1803 = vmatpush.bf16.msra.mxu0 %v1689
    %1804 = vmatpush.bf16.msra.mxu0 %v1687
    %1805 = vmatpush.bf16.msra.mxu0 %v1685
    %1806 = vmatpush.bf16.msra.mxu0 %v1683
    %1807 = vmatpush.bf16.msra.mxu0 %v1681
    %1808 = vmatpush.bf16.msra.mxu0 %v1679
    %1809 = vmatpush.bf16.msra.mxu0 %v1677
    %1810 = vmatpush.bf16.msra.mxu0 %v1675
    %1811 = vmatmul.bf16.gmra.mxu0 %v1387
    %v1812 = vpop.f32.mrf.mxu0
    %v1813 = vadd.f32 0.0, %v1812
    %v1814 = vpop.f32.mrf.mxu0
    %v1815 = vadd.f32 0.0, %v1814
    %1816 = vmatmul.bf16.gmra.mxu0 %v1391
    %v1817 = vpop.f32.mrf.mxu0
    %v1818 = vadd.f32 0.0, %v1817
    %v1819 = vpop.f32.mrf.mxu0
    %v1820 = vadd.f32 0.0, %v1819
    %1821 = vmatmul.bf16.gmra.mxu0 %v1395
    %v1822 = vpop.f32.mrf.mxu0
    %v1823 = vadd.f32 0.0, %v1822
    %v1824 = vpop.f32.mrf.mxu0
    %v1825 = vadd.f32 0.0, %v1824
    %1826 = vmatmul.bf16.gmra.mxu0 %v1399
    %v1827 = vpop.f32.mrf.mxu0
    %v1828 = vadd.f32 0.0, %v1827
    %v1829 = vpop.f32.mrf.mxu0
    %v1830 = vadd.f32 0.0, %v1829
    %1831 = vmatmul.bf16.gmra.mxu0 %v1403
    %v1832 = vpop.f32.mrf.mxu0
    %v1833 = vadd.f32 0.0, %v1832
    %v1834 = vpop.f32.mrf.mxu0
    %v1835 = vadd.f32 0.0, %v1834
    %1836 = vmatmul.bf16.gmra.mxu0 %v1407
    %v1837 = vpop.f32.mrf.mxu0
    %v1838 = vadd.f32 0.0, %v1837
    %v1839 = vpop.f32.mrf.mxu0
    %v1840 = vadd.f32 0.0, %v1839
    %1841 = vmatmul.bf16.gmra.mxu0 %v1411
    %v1842 = vpop.f32.mrf.mxu0
    %v1843 = vadd.f32 0.0, %v1842
    %v1844 = vpop.f32.mrf.mxu0
    %v1845 = vadd.f32 0.0, %v1844
    %1846 = vmatmul.bf16.gmra.mxu0 %v1415
    %v1847 = vpop.f32.mrf.mxu0
    %v1848 = vadd.f32 0.0, %v1847
    %v1849 = vpop.f32.mrf.mxu0
    %v1850 = vadd.f32 0.0, %v1849
    %1851 = vdwg.mxu0
    %1852 = vmatpush.bf16.msra.mxu0 %v1705
    %1853 = vmatpush.bf16.msra.mxu0 %v1703
    %1854 = vmatpush.bf16.msra.mxu0 %v1701
    %1855 = vmatpush.bf16.msra.mxu0 %v1699
    %1856 = vmatpush.bf16.msra.mxu0 %v1697
    %1857 = vmatpush.bf16.msra.mxu0 %v1695
    %1858 = vmatpush.bf16.msra.mxu0 %v1693
    %1859 = vmatpush.bf16.msra.mxu0 %v1691
    %1860 = vmatmul.bf16.gmra.mxu0 %v1388
    %v1861 = vpop.f32.mrf.mxu0
    %v1862 = vadd.f32 %v1813, %v1861
    %v1863 = vpop.f32.mrf.mxu0
    %v1864 = vadd.f32 %v1815, %v1863
    %1865 = vmatmul.bf16.gmra.mxu0 %v1392
    %v1866 = vpop.f32.mrf.mxu0
    %v1867 = vadd.f32 %v1818, %v1866
    %v1868 = vpop.f32.mrf.mxu0
    %v1869 = vadd.f32 %v1820, %v1868
    %1870 = vmatmul.bf16.gmra.mxu0 %v1396
    %v1871 = vpop.f32.mrf.mxu0
    %v1872 = vadd.f32 %v1823, %v1871
    %v1873 = vpop.f32.mrf.mxu0
    %v1874 = vadd.f32 %v1825, %v1873
    %1875 = vmatmul.bf16.gmra.mxu0 %v1400
    %v1876 = vpop.f32.mrf.mxu0
    %v1877 = vadd.f32 %v1828, %v1876
    %v1878 = vpop.f32.mrf.mxu0
    %v1879 = vadd.f32 %v1830, %v1878
    %1880 = vmatmul.bf16.gmra.mxu0 %v1404
    %v1881 = vpop.f32.mrf.mxu0
    %v1882 = vadd.f32 %v1833, %v1881
    %v1883 = vpop.f32.mrf.mxu0
    %v1884 = vadd.f32 %v1835, %v1883
    %1885 = vmatmul.bf16.gmra.mxu0 %v1408
    %v1886 = vpop.f32.mrf.mxu0
    %v1887 = vadd.f32 %v1838, %v1886
    %v1888 = vpop.f32.mrf.mxu0
    %v1889 = vadd.f32 %v1840, %v1888
    %1890 = vmatmul.bf16.gmra.mxu0 %v1412
    %v1891 = vpop.f32.mrf.mxu0
    %v1892 = vadd.f32 %v1843, %v1891
    %v1893 = vpop.f32.mrf.mxu0
    %v1894 = vadd.f32 %v1845, %v1893
    %1895 = vmatmul.bf16.gmra.mxu0 %v1416
    %v1896 = vpop.f32.mrf.mxu0
    %v1897 = vadd.f32 %v1848, %v1896
    %v1898 = vpop.f32.mrf.mxu0
    %v1899 = vadd.f32 %v1850, %v1898
    %1900 = vdwg.mxu0
    %1901 = vmatpush.bf16.msra.mxu0 %v1721
    %1902 = vmatpush.bf16.msra.mxu0 %v1719
    %1903 = vmatpush.bf16.msra.mxu0 %v1717
    %1904 = vmatpush.bf16.msra.mxu0 %v1715
    %1905 = vmatpush.bf16.msra.mxu0 %v1713
    %1906 = vmatpush.bf16.msra.mxu0 %v1711
    %1907 = vmatpush.bf16.msra.mxu0 %v1709
    %1908 = vmatpush.bf16.msra.mxu0 %v1707
    %1909 = vmatmul.bf16.gmra.mxu0 %v1389
    %v1910 = vpop.f32.mrf.mxu0
    %v1911 = vadd.f32 %v1862, %v1910
    %v1912 = vpop.f32.mrf.mxu0
    %v1913 = vadd.f32 %v1864, %v1912
    %1914 = vmatmul.bf16.gmra.mxu0 %v1393
    %v1915 = vpop.f32.mrf.mxu0
    %v1916 = vadd.f32 %v1867, %v1915
    %v1917 = vpop.f32.mrf.mxu0
    %v1918 = vadd.f32 %v1869, %v1917
    %1919 = vmatmul.bf16.gmra.mxu0 %v1397
    %v1920 = vpop.f32.mrf.mxu0
    %v1921 = vadd.f32 %v1872, %v1920
    %v1922 = vpop.f32.mrf.mxu0
    %v1923 = vadd.f32 %v1874, %v1922
    %1924 = vmatmul.bf16.gmra.mxu0 %v1401
    %v1925 = vpop.f32.mrf.mxu0
    %v1926 = vadd.f32 %v1877, %v1925
    %v1927 = vpop.f32.mrf.mxu0
    %v1928 = vadd.f32 %v1879, %v1927
    %1929 = vmatmul.bf16.gmra.mxu0 %v1405
    %v1930 = vpop.f32.mrf.mxu0
    %v1931 = vadd.f32 %v1882, %v1930
    %v1932 = vpop.f32.mrf.mxu0
    %v1933 = vadd.f32 %v1884, %v1932
    %1934 = vmatmul.bf16.gmra.mxu0 %v1409
    %v1935 = vpop.f32.mrf.mxu0
    %v1936 = vadd.f32 %v1887, %v1935
    %v1937 = vpop.f32.mrf.mxu0
    %v1938 = vadd.f32 %v1889, %v1937
    %1939 = vmatmul.bf16.gmra.mxu0 %v1413
    %v1940 = vpop.f32.mrf.mxu0
    %v1941 = vadd.f32 %v1892, %v1940
    %v1942 = vpop.f32.mrf.mxu0
    %v1943 = vadd.f32 %v1894, %v1942
    %1944 = vmatmul.bf16.gmra.mxu0 %v1417
    %v1945 = vpop.f32.mrf.mxu0
    %v1946 = vadd.f32 %v1897, %v1945
    %v1947 = vpop.f32.mrf.mxu0
    %v1948 = vadd.f32 %v1899, %v1947
    %1949 = vdwg.mxu0
    %1950 = vmatpush.bf16.msra.mxu0 %v1737
    %1951 = vmatpush.bf16.msra.mxu0 %v1735
    %1952 = vmatpush.bf16.msra.mxu0 %v1733
    %1953 = vmatpush.bf16.msra.mxu0 %v1731
    %1954 = vmatpush.bf16.msra.mxu0 %v1729
    %1955 = vmatpush.bf16.msra.mxu0 %v1727
    %1956 = vmatpush.bf16.msra.mxu0 %v1725
    %1957 = vmatpush.bf16.msra.mxu0 %v1723
    %1958 = vmatmul.bf16.gmra.mxu0 %v1390
    %v1959 = vpop.f32.mrf.mxu0
    %v1960 = vadd.f32 %v1911, %v1959
    %v1961 = vpop.f32.mrf.mxu0
    %v1962 = vadd.f32 %v1913, %v1961
    %1963 = vmatmul.bf16.gmra.mxu0 %v1394
    %v1964 = vpop.f32.mrf.mxu0
    %v1965 = vadd.f32 %v1916, %v1964
    %v1966 = vpop.f32.mrf.mxu0
    %v1967 = vadd.f32 %v1918, %v1966
    %1968 = vmatmul.bf16.gmra.mxu0 %v1398
    %v1969 = vpop.f32.mrf.mxu0
    %v1970 = vadd.f32 %v1921, %v1969
    %v1971 = vpop.f32.mrf.mxu0
    %v1972 = vadd.f32 %v1923, %v1971
    %1973 = vmatmul.bf16.gmra.mxu0 %v1402
    %v1974 = vpop.f32.mrf.mxu0
    %v1975 = vadd.f32 %v1926, %v1974
    %v1976 = vpop.f32.mrf.mxu0
    %v1977 = vadd.f32 %v1928, %v1976
    %1978 = vmatmul.bf16.gmra.mxu0 %v1406
    %v1979 = vpop.f32.mrf.mxu0
    %v1980 = vadd.f32 %v1931, %v1979
    %v1981 = vpop.f32.mrf.mxu0
    %v1982 = vadd.f32 %v1933, %v1981
    %1983 = vmatmul.bf16.gmra.mxu0 %v1410
    %v1984 = vpop.f32.mrf.mxu0
    %v1985 = vadd.f32 %v1936, %v1984
    %v1986 = vpop.f32.mrf.mxu0
    %v1987 = vadd.f32 %v1938, %v1986
    %1988 = vmatmul.bf16.gmra.mxu0 %v1414
    %v1989 = vpop.f32.mrf.mxu0
    %v1990 = vadd.f32 %v1941, %v1989
    %v1991 = vpop.f32.mrf.mxu0
    %v1992 = vadd.f32 %v1943, %v1991
    %1993 = vmatmul.bf16.gmra.mxu0 %v1418
    %v1994 = vpop.f32.mrf.mxu0
    %v1995 = vadd.f32 %v1946, %v1994
    %v1996 = vpop.f32.mrf.mxu0
    %v1997 = vadd.f32 %v1948, %v1996
    %1998 = vdwg.mxu0
    %1999 = vmatpush.bf16.msra.mxu0 %v1690
    %2000 = vmatpush.bf16.msra.mxu0 %v1688
    %2001 = vmatpush.bf16.msra.mxu0 %v1686
    %2002 = vmatpush.bf16.msra.mxu0 %v1684
    %2003 = vmatpush.bf16.msra.mxu0 %v1682
    %2004 = vmatpush.bf16.msra.mxu0 %v1680
    %2005 = vmatpush.bf16.msra.mxu0 %v1678
    %2006 = vmatpush.bf16.msra.mxu0 %v1676
    %2007 = vmatmul.bf16.gmra.mxu0 %v1387
    %v2008 = vpop.f32.mrf.mxu0
    %v2009 = vadd.f32 0.0, %v2008
    %v2010 = vpop.f32.mrf.mxu0
    %v2011 = vadd.f32 0.0, %v2010
    %2012 = vmatmul.bf16.gmra.mxu0 %v1391
    %v2013 = vpop.f32.mrf.mxu0
    %v2014 = vadd.f32 0.0, %v2013
    %v2015 = vpop.f32.mrf.mxu0
    %v2016 = vadd.f32 0.0, %v2015
    %2017 = vmatmul.bf16.gmra.mxu0 %v1395
    %v2018 = vpop.f32.mrf.mxu0
    %v2019 = vadd.f32 0.0, %v2018
    %v2020 = vpop.f32.mrf.mxu0
    %v2021 = vadd.f32 0.0, %v2020
    %2022 = vmatmul.bf16.gmra.mxu0 %v1399
    %v2023 = vpop.f32.mrf.mxu0
    %v2024 = vadd.f32 0.0, %v2023
    %v2025 = vpop.f32.mrf.mxu0
    %v2026 = vadd.f32 0.0, %v2025
    %2027 = vmatmul.bf16.gmra.mxu0 %v1403
    %v2028 = vpop.f32.mrf.mxu0
    %v2029 = vadd.f32 0.0, %v2028
    %v2030 = vpop.f32.mrf.mxu0
    %v2031 = vadd.f32 0.0, %v2030
    %2032 = vmatmul.bf16.gmra.mxu0 %v1407
    %v2033 = vpop.f32.mrf.mxu0
    %v2034 = vadd.f32 0.0, %v2033
    %v2035 = vpop.f32.mrf.mxu0
    %v2036 = vadd.f32 0.0, %v2035
    %2037 = vmatmul.bf16.gmra.mxu0 %v1411
    %v2038 = vpop.f32.mrf.mxu0
    %v2039 = vadd.f32 0.0, %v2038
    %v2040 = vpop.f32.mrf.mxu0
    %v2041 = vadd.f32 0.0, %v2040
    %2042 = vmatmul.bf16.gmra.mxu0 %v1415
    %v2043 = vpop.f32.mrf.mxu0
    %v2044 = vadd.f32 0.0, %v2043
    %v2045 = vpop.f32.mrf.mxu0
    %v2046 = vadd.f32 0.0, %v2045
    %2047 = vdwg.mxu0
    %2048 = vmatpush.bf16.msra.mxu0 %v1706
    %2049 = vmatpush.bf16.msra.mxu0 %v1704
    %2050 = vmatpush.bf16.msra.mxu0 %v1702
    %2051 = vmatpush.bf16.msra.mxu0 %v1700
    %2052 = vmatpush.bf16.msra.mxu0 %v1698
    %2053 = vmatpush.bf16.msra.mxu0 %v1696
    %2054 = vmatpush.bf16.msra.mxu0 %v1694
    %2055 = vmatpush.bf16.msra.mxu0 %v1692
    %2056 = vmatmul.bf16.gmra.mxu0 %v1388
    %v2057 = vpop.f32.mrf.mxu0
    %v2058 = vadd.f32 %v2009, %v2057
    %v2059 = vpop.f32.mrf.mxu0
    %v2060 = vadd.f32 %v2011, %v2059
    %2061 = vmatmul.bf16.gmra.mxu0 %v1392
    %v2062 = vpop.f32.mrf.mxu0
    %v2063 = vadd.f32 %v2014, %v2062
    %v2064 = vpop.f32.mrf.mxu0
    %v2065 = vadd.f32 %v2016, %v2064
    %2066 = vmatmul.bf16.gmra.mxu0 %v1396
    %v2067 = vpop.f32.mrf.mxu0
    %v2068 = vadd.f32 %v2019, %v2067
    %v2069 = vpop.f32.mrf.mxu0
    %v2070 = vadd.f32 %v2021, %v2069
    %2071 = vmatmul.bf16.gmra.mxu0 %v1400
    %v2072 = vpop.f32.mrf.mxu0
    %v2073 = vadd.f32 %v2024, %v2072
    %v2074 = vpop.f32.mrf.mxu0
    %v2075 = vadd.f32 %v2026, %v2074
    %2076 = vmatmul.bf16.gmra.mxu0 %v1404
    %v2077 = vpop.f32.mrf.mxu0
    %v2078 = vadd.f32 %v2029, %v2077
    %v2079 = vpop.f32.mrf.mxu0
    %v2080 = vadd.f32 %v2031, %v2079
    %2081 = vmatmul.bf16.gmra.mxu0 %v1408
    %v2082 = vpop.f32.mrf.mxu0
    %v2083 = vadd.f32 %v2034, %v2082
    %v2084 = vpop.f32.mrf.mxu0
    %v2085 = vadd.f32 %v2036, %v2084
    %2086 = vmatmul.bf16.gmra.mxu0 %v1412
    %v2087 = vpop.f32.mrf.mxu0
    %v2088 = vadd.f32 %v2039, %v2087
    %v2089 = vpop.f32.mrf.mxu0
    %v2090 = vadd.f32 %v2041, %v2089
    %2091 = vmatmul.bf16.gmra.mxu0 %v1416
    %v2092 = vpop.f32.mrf.mxu0
    %v2093 = vadd.f32 %v2044, %v2092
    %v2094 = vpop.f32.mrf.mxu0
    %v2095 = vadd.f32 %v2046, %v2094
    %2096 = vdwg.mxu0
    %2097 = vmatpush.bf16.msra.mxu0 %v1722
    %2098 = vmatpush.bf16.msra.mxu0 %v1720
    %2099 = vmatpush.bf16.msra.mxu0 %v1718
    %2100 = vmatpush.bf16.msra.mxu0 %v1716
    %2101 = vmatpush.bf16.msra.mxu0 %v1714
    %2102 = vmatpush.bf16.msra.mxu0 %v1712
    %2103 = vmatpush.bf16.msra.mxu0 %v1710
    %2104 = vmatpush.bf16.msra.mxu0 %v1708
    %2105 = vmatmul.bf16.gmra.mxu0 %v1389
    %v2106 = vpop.f32.mrf.mxu0
    %v2107 = vadd.f32 %v2058, %v2106
    %v2108 = vpop.f32.mrf.mxu0
    %v2109 = vadd.f32 %v2060, %v2108
    %2110 = vmatmul.bf16.gmra.mxu0 %v1393
    %v2111 = vpop.f32.mrf.mxu0
    %v2112 = vadd.f32 %v2063, %v2111
    %v2113 = vpop.f32.mrf.mxu0
    %v2114 = vadd.f32 %v2065, %v2113
    %2115 = vmatmul.bf16.gmra.mxu0 %v1397
    %v2116 = vpop.f32.mrf.mxu0
    %v2117 = vadd.f32 %v2068, %v2116
    %v2118 = vpop.f32.mrf.mxu0
    %v2119 = vadd.f32 %v2070, %v2118
    %2120 = vmatmul.bf16.gmra.mxu0 %v1401
    %v2121 = vpop.f32.mrf.mxu0
    %v2122 = vadd.f32 %v2073, %v2121
    %v2123 = vpop.f32.mrf.mxu0
    %v2124 = vadd.f32 %v2075, %v2123
    %2125 = vmatmul.bf16.gmra.mxu0 %v1405
    %v2126 = vpop.f32.mrf.mxu0
    %v2127 = vadd.f32 %v2078, %v2126
    %v2128 = vpop.f32.mrf.mxu0
    %v2129 = vadd.f32 %v2080, %v2128
    %2130 = vmatmul.bf16.gmra.mxu0 %v1409
    %v2131 = vpop.f32.mrf.mxu0
    %v2132 = vadd.f32 %v2083, %v2131
    %v2133 = vpop.f32.mrf.mxu0
    %v2134 = vadd.f32 %v2085, %v2133
    %2135 = vmatmul.bf16.gmra.mxu0 %v1413
    %v2136 = vpop.f32.mrf.mxu0
    %v2137 = vadd.f32 %v2088, %v2136
    %v2138 = vpop.f32.mrf.mxu0
    %v2139 = vadd.f32 %v2090, %v2138
    %2140 = vmatmul.bf16.gmra.mxu0 %v1417
    %v2141 = vpop.f32.mrf.mxu0
    %v2142 = vadd.f32 %v2093, %v2141
    %v2143 = vpop.f32.mrf.mxu0
    %v2144 = vadd.f32 %v2095, %v2143
    %2145 = vdwg.mxu0
    %2146 = vmatpush.bf16.msra.mxu0 %v1738
    %2147 = vmatpush.bf16.msra.mxu0 %v1736
    %2148 = vmatpush.bf16.msra.mxu0 %v1734
    %2149 = vmatpush.bf16.msra.mxu0 %v1732
    %2150 = vmatpush.bf16.msra.mxu0 %v1730
    %2151 = vmatpush.bf16.msra.mxu0 %v1728
    %2152 = vmatpush.bf16.msra.mxu0 %v1726
    %2153 = vmatpush.bf16.msra.mxu0 %v1724
    %2154 = vmatmul.bf16.gmra.mxu0 %v1390
    %v2155 = vpop.f32.mrf.mxu0
    %v2156 = vadd.f32 %v2107, %v2155
    %v2157 = vpop.f32.mrf.mxu0
    %v2158 = vadd.f32 %v2109, %v2157
    %2159 = vmatmul.bf16.gmra.mxu0 %v1394
    %v2160 = vpop.f32.mrf.mxu0
    %v2161 = vadd.f32 %v2112, %v2160
    %v2162 = vpop.f32.mrf.mxu0
    %v2163 = vadd.f32 %v2114, %v2162
    %2164 = vmatmul.bf16.gmra.mxu0 %v1398
    %v2165 = vpop.f32.mrf.mxu0
    %v2166 = vadd.f32 %v2117, %v2165
    %v2167 = vpop.f32.mrf.mxu0
    %v2168 = vadd.f32 %v2119, %v2167
    %2169 = vmatmul.bf16.gmra.mxu0 %v1402
    %v2170 = vpop.f32.mrf.mxu0
    %v2171 = vadd.f32 %v2122, %v2170
    %v2172 = vpop.f32.mrf.mxu0
    %v2173 = vadd.f32 %v2124, %v2172
    %2174 = vmatmul.bf16.gmra.mxu0 %v1406
    %v2175 = vpop.f32.mrf.mxu0
    %v2176 = vadd.f32 %v2127, %v2175
    %v2177 = vpop.f32.mrf.mxu0
    %v2178 = vadd.f32 %v2129, %v2177
    %2179 = vmatmul.bf16.gmra.mxu0 %v1410
    %v2180 = vpop.f32.mrf.mxu0
    %v2181 = vadd.f32 %v2132, %v2180
    %v2182 = vpop.f32.mrf.mxu0
    %v2183 = vadd.f32 %v2134, %v2182
    %2184 = vmatmul.bf16.gmra.mxu0 %v1414
    %v2185 = vpop.f32.mrf.mxu0
    %v2186 = vadd.f32 %v2137, %v2185
    %v2187 = vpop.f32.mrf.mxu0
    %v2188 = vadd.f32 %v2139, %v2187
    %2189 = vmatmul.bf16.gmra.mxu0 %v1418
    %v2190 = vpop.f32.mrf.mxu0
    %v2191 = vadd.f32 %v2142, %v2190
    %v2192 = vpop.f32.mrf.mxu0
    %v2193 = vadd.f32 %v2144, %v2192
    %2194 = vdwg.mxu0
    %v2195 = vpack.c.bf16 %v2156, %v1960
    %v2196 = vpack.c.bf16 %v2158, %v1962
    %v2197 = vpack.c.bf16 %v2161, %v1965
    %v2198 = vpack.c.bf16 %v2163, %v1967
    %v2199 = vpack.c.bf16 %v2166, %v1970
    %v2200 = vpack.c.bf16 %v2168, %v1972
    %v2201 = vpack.c.bf16 %v2171, %v1975
    %v2202 = vpack.c.bf16 %v2173, %v1977
    %v2203 = vpack.c.bf16 %v2176, %v1980
    %v2204 = vpack.c.bf16 %v2178, %v1982
    %v2205 = vpack.c.bf16 %v2181, %v1985
    %v2206 = vpack.c.bf16 %v2183, %v1987
    %v2207 = vpack.c.bf16 %v2186, %v1990
    %v2208 = vpack.c.bf16 %v2188, %v1992
    %v2209 = vpack.c.bf16 %v2191, %v1995
    %v2210 = vpack.c.bf16 %v2193, %v1997
    %v2211 = vld [vmem:[%s4] sm:$0x3]
    %2213 = vst [vmem:[#allocation1] ss:$9 sm:$0xff] %v2211
    %v2214 = vld [vmem:[#allocation1] sm:$0xff]
    %v2215 = vld [vmem:[#allocation1 + $0x9] sm:$0xff]
    %v2216 = vpack.i.b16 %v2214, %v2214
    %v2218 = vperm.slane %v2216, 0
    %v2219 = vpack.i.b16 %v2215, %v2215
    %v2221 = vperm.slane %v2219, 0
    %v2222 = vunpack.c.l.bf16 %v2195
    %v2223 = vunpack.c.h.bf16 %v2195
    %v2224 = vunpack.c.l.bf16 %v2196
    %v2225 = vunpack.c.h.bf16 %v2196
    %v2226 = vunpack.c.l.bf16 %v2197
    %v2227 = vunpack.c.h.bf16 %v2197
    %v2228 = vunpack.c.l.bf16 %v2198
    %v2229 = vunpack.c.h.bf16 %v2198
    %v2230 = vunpack.c.l.bf16 %v2199
    %v2231 = vunpack.c.h.bf16 %v2199
    %v2232 = vunpack.c.l.bf16 %v2200
    %v2233 = vunpack.c.h.bf16 %v2200
    %v2234 = vunpack.c.l.bf16 %v2201
    %v2235 = vunpack.c.h.bf16 %v2201
    %v2236 = vunpack.c.l.bf16 %v2202
    %v2237 = vunpack.c.h.bf16 %v2202
    %v2238 = vunpack.c.l.bf16 %v2203
    %v2239 = vunpack.c.h.bf16 %v2203
    %v2240 = vunpack.c.l.bf16 %v2204
    %v2241 = vunpack.c.h.bf16 %v2204
    %v2242 = vunpack.c.l.bf16 %v2205
    %v2243 = vunpack.c.h.bf16 %v2205
    %v2244 = vunpack.c.l.bf16 %v2206
    %v2245 = vunpack.c.h.bf16 %v2206
    %v2246 = vunpack.c.l.bf16 %v2207
    %v2247 = vunpack.c.h.bf16 %v2207
    %v2248 = vunpack.c.l.bf16 %v2208
    %v2249 = vunpack.c.h.bf16 %v2208
    %v2250 = vunpack.c.l.bf16 %v2209
    %v2251 = vunpack.c.h.bf16 %v2209
    %v2252 = vunpack.c.l.bf16 %v2210
    %v2253 = vunpack.c.h.bf16 %v2210
    %v2254 = vunpack.c.l.bf16 %v2218
    %v2255 = vunpack.c.l.bf16 %v2221
    %v2256 = vadd.f32 %v2222, %v2254
    %v2257 = vadd.f32 %v2223, %v2255
    %v2258 = vadd.f32 %v2224, %v2254
    %v2259 = vadd.f32 %v2225, %v2255
    %v2260 = vadd.f32 %v2226, %v2254
    %v2261 = vadd.f32 %v2227, %v2255
    %v2262 = vadd.f32 %v2228, %v2254
    %v2263 = vadd.f32 %v2229, %v2255
    %v2264 = vadd.f32 %v2230, %v2254
    %v2265 = vadd.f32 %v2231, %v2255
    %v2266 = vadd.f32 %v2232, %v2254
    %v2267 = vadd.f32 %v2233, %v2255
    %v2268 = vadd.f32 %v2234, %v2254
    %v2269 = vadd.f32 %v2235, %v2255
    %v2270 = vadd.f32 %v2236, %v2254
    %v2271 = vadd.f32 %v2237, %v2255
    %v2272 = vadd.f32 %v2238, %v2254
    %v2273 = vadd.f32 %v2239, %v2255
    %v2274 = vadd.f32 %v2240, %v2254
    %v2275 = vadd.f32 %v2241, %v2255
    %v2276 = vadd.f32 %v2242, %v2254
    %v2277 = vadd.f32 %v2243, %v2255
    %v2278 = vadd.f32 %v2244, %v2254
    %v2279 = vadd.f32 %v2245, %v2255
    %v2280 = vadd.f32 %v2246, %v2254
    %v2281 = vadd.f32 %v2247, %v2255
    %v2282 = vadd.f32 %v2248, %v2254
    %v2283 = vadd.f32 %v2249, %v2255
    %v2284 = vadd.f32 %v2250, %v2254
    %v2285 = vadd.f32 %v2251, %v2255
    %v2286 = vadd.f32 %v2252, %v2254
    %v2287 = vadd.f32 %v2253, %v2255
    %v2288 = vpack.c.bf16 %v2257, %v2256
    %v2289 = vpack.c.bf16 %v2259, %v2258
    %v2290 = vpack.c.bf16 %v2261, %v2260
    %v2291 = vpack.c.bf16 %v2263, %v2262
    %v2292 = vpack.c.bf16 %v2265, %v2264
    %v2293 = vpack.c.bf16 %v2267, %v2266
    %v2294 = vpack.c.bf16 %v2269, %v2268
    %v2295 = vpack.c.bf16 %v2271, %v2270
    %v2296 = vpack.c.bf16 %v2273, %v2272
    %v2297 = vpack.c.bf16 %v2275, %v2274
    %v2298 = vpack.c.bf16 %v2277, %v2276
    %v2299 = vpack.c.bf16 %v2279, %v2278
    %v2300 = vpack.c.bf16 %v2281, %v2280
    %v2301 = vpack.c.bf16 %v2283, %v2282
    %v2302 = vpack.c.bf16 %v2285, %v2284
    %v2303 = vpack.c.bf16 %v2287, %v2286
    %v2304 = vunpack.c.l.bf16 %v2288
    %v2305 = vunpack.c.h.bf16 %v2288
    %v2306 = vunpack.c.l.bf16 %v2289
    %v2307 = vunpack.c.h.bf16 %v2289
    %v2308 = vunpack.c.l.bf16 %v2290
    %v2309 = vunpack.c.h.bf16 %v2290
    %v2310 = vunpack.c.l.bf16 %v2291
    %v2311 = vunpack.c.h.bf16 %v2291
    %v2312 = vunpack.c.l.bf16 %v2292
    %v2313 = vunpack.c.h.bf16 %v2292
    %v2314 = vunpack.c.l.bf16 %v2293
    %v2315 = vunpack.c.h.bf16 %v2293
    %v2316 = vunpack.c.l.bf16 %v2294
    %v2317 = vunpack.c.h.bf16 %v2294
    %v2318 = vunpack.c.l.bf16 %v2295
    %v2319 = vunpack.c.h.bf16 %v2295
    %v2320 = vunpack.c.l.bf16 %v2296
    %v2321 = vunpack.c.h.bf16 %v2296
    %v2322 = vunpack.c.l.bf16 %v2297
    %v2323 = vunpack.c.h.bf16 %v2297
    %v2324 = vunpack.c.l.bf16 %v2298
    %v2325 = vunpack.c.h.bf16 %v2298
    %v2326 = vunpack.c.l.bf16 %v2299
    %v2327 = vunpack.c.h.bf16 %v2299
    %v2328 = vunpack.c.l.bf16 %v2300
    %v2329 = vunpack.c.h.bf16 %v2300
    %v2330 = vunpack.c.l.bf16 %v2301
    %v2331 = vunpack.c.h.bf16 %v2301
    %v2332 = vunpack.c.l.bf16 %v2302
    %v2333 = vunpack.c.h.bf16 %v2302
    %v2334 = vunpack.c.l.bf16 %v2303
    %v2335 = vunpack.c.h.bf16 %v2303
    %v2336 = vmul.f32 %v2304, 0.20019531
    %v2337 = vmul.f32 %v2305, 0.20019531
    %v2338 = vmul.f32 %v2306, 0.20019531
    %v2339 = vmul.f32 %v2307, 0.20019531
    %v2340 = vmul.f32 %v2308, 0.20019531
    %v2341 = vmul.f32 %v2309, 0.20019531
    %v2342 = vmul.f32 %v2310, 0.20019531
    %v2343 = vmul.f32 %v2311, 0.20019531
    %v2344 = vmul.f32 %v2312, 0.20019531
    %v2345 = vmul.f32 %v2313, 0.20019531
    %v2346 = vmul.f32 %v2314, 0.20019531
    %v2347 = vmul.f32 %v2315, 0.20019531
    %v2348 = vmul.f32 %v2316, 0.20019531
    %v2349 = vmul.f32 %v2317, 0.20019531
    %v2350 = vmul.f32 %v2318, 0.20019531
    %v2351 = vmul.f32 %v2319, 0.20019531
    %v2352 = vmul.f32 %v2320, 0.20019531
    %v2353 = vmul.f32 %v2321, 0.20019531
    %v2354 = vmul.f32 %v2322, 0.20019531
    %v2355 = vmul.f32 %v2323, 0.20019531
    %v2356 = vmul.f32 %v2324, 0.20019531
    %v2357 = vmul.f32 %v2325, 0.20019531
    %v2358 = vmul.f32 %v2326, 0.20019531
    %v2359 = vmul.f32 %v2327, 0.20019531
    %v2360 = vmul.f32 %v2328, 0.20019531
    %v2361 = vmul.f32 %v2329, 0.20019531
    %v2362 = vmul.f32 %v2330, 0.20019531
    %v2363 = vmul.f32 %v2331, 0.20019531
    %v2364 = vmul.f32 %v2332, 0.20019531
    %v2365 = vmul.f32 %v2333, 0.20019531
    %v2366 = vmul.f32 %v2334, 0.20019531
    %v2367 = vmul.f32 %v2335, 0.20019531
    %v2368 = vpack.c.bf16 %v2337, %v2336
    %v2369 = vpack.c.bf16 %v2339, %v2338
    %v2370 = vpack.c.bf16 %v2341, %v2340
    %v2371 = vpack.c.bf16 %v2343, %v2342
    %v2372 = vpack.c.bf16 %v2345, %v2344
    %v2373 = vpack.c.bf16 %v2347, %v2346
    %v2374 = vpack.c.bf16 %v2349, %v2348
    %v2375 = vpack.c.bf16 %v2351, %v2350
    %v2376 = vpack.c.bf16 %v2353, %v2352
    %v2377 = vpack.c.bf16 %v2355, %v2354
    %v2378 = vpack.c.bf16 %v2357, %v2356
    %v2379 = vpack.c.bf16 %v2359, %v2358
    %v2380 = vpack.c.bf16 %v2361, %v2360
    %v2381 = vpack.c.bf16 %v2363, %v2362
    %v2382 = vpack.c.bf16 %v2365, %v2364
    %v2383 = vpack.c.bf16 %v2367, %v2366
    %v2384 = vunpack.c.l.bf16 %v2368
    %v2385 = vunpack.c.h.bf16 %v2368
    %v2386 = vunpack.c.l.bf16 %v2369
    %v2387 = vunpack.c.h.bf16 %v2369
    %v2388 = vunpack.c.l.bf16 %v2370
    %v2389 = vunpack.c.h.bf16 %v2370
    %v2390 = vunpack.c.l.bf16 %v2371
    %v2391 = vunpack.c.h.bf16 %v2371
    %v2392 = vunpack.c.l.bf16 %v2372
    %v2393 = vunpack.c.h.bf16 %v2372
    %v2394 = vunpack.c.l.bf16 %v2373
    %v2395 = vunpack.c.h.bf16 %v2373
    %v2396 = vunpack.c.l.bf16 %v2374
    %v2397 = vunpack.c.h.bf16 %v2374
    %v2398 = vunpack.c.l.bf16 %v2375
    %v2399 = vunpack.c.h.bf16 %v2375
    %v2400 = vunpack.c.l.bf16 %v2376
    %v2401 = vunpack.c.h.bf16 %v2376
    %v2402 = vunpack.c.l.bf16 %v2377
    %v2403 = vunpack.c.h.bf16 %v2377
    %v2404 = vunpack.c.l.bf16 %v2378
    %v2405 = vunpack.c.h.bf16 %v2378
    %v2406 = vunpack.c.l.bf16 %v2379
    %v2407 = vunpack.c.h.bf16 %v2379
    %v2408 = vunpack.c.l.bf16 %v2380
    %v2409 = vunpack.c.h.bf16 %v2380
    %v2410 = vunpack.c.l.bf16 %v2381
    %v2411 = vunpack.c.h.bf16 %v2381
    %v2412 = vunpack.c.l.bf16 %v2382
    %v2413 = vunpack.c.h.bf16 %v2382
    %v2414 = vunpack.c.l.bf16 %v2383
    %v2415 = vunpack.c.h.bf16 %v2383
    %v2416 = vmax.f32 %v2304, %v2384
    %v2417 = vmax.f32 %v2305, %v2385
    %v2418 = vmax.f32 %v2306, %v2386
    %v2419 = vmax.f32 %v2307, %v2387
    %v2420 = vmax.f32 %v2308, %v2388
    %v2421 = vmax.f32 %v2309, %v2389
    %v2422 = vmax.f32 %v2310, %v2390
    %v2423 = vmax.f32 %v2311, %v2391
    %v2424 = vmax.f32 %v2312, %v2392
    %v2425 = vmax.f32 %v2313, %v2393
    %v2426 = vmax.f32 %v2314, %v2394
    %v2427 = vmax.f32 %v2315, %v2395
    %v2428 = vmax.f32 %v2316, %v2396
    %v2429 = vmax.f32 %v2317, %v2397
    %v2430 = vmax.f32 %v2318, %v2398
    %v2431 = vmax.f32 %v2319, %v2399
    %v2432 = vmax.f32 %v2320, %v2400
    %v2433 = vmax.f32 %v2321, %v2401
    %v2434 = vmax.f32 %v2322, %v2402
    %v2435 = vmax.f32 %v2323, %v2403
    %v2436 = vmax.f32 %v2324, %v2404
    %v2437 = vmax.f32 %v2325, %v2405
    %v2438 = vmax.f32 %v2326, %v2406
    %v2439 = vmax.f32 %v2327, %v2407
    %v2440 = vmax.f32 %v2328, %v2408
    %v2441 = vmax.f32 %v2329, %v2409
    %v2442 = vmax.f32 %v2330, %v2410
    %v2443 = vmax.f32 %v2331, %v2411
    %v2444 = vmax.f32 %v2332, %v2412
    %v2445 = vmax.f32 %v2333, %v2413
    %v2446 = vmax.f32 %v2334, %v2414
    %v2447 = vmax.f32 %v2335, %v2415
    %v2448 = vpack.c.bf16 %v2417, %v2416
    %v2449 = vpack.c.bf16 %v2419, %v2418
    %v2450 = vpack.c.bf16 %v2421, %v2420
    %v2451 = vpack.c.bf16 %v2423, %v2422
    %v2452 = vpack.c.bf16 %v2425, %v2424
    %v2453 = vpack.c.bf16 %v2427, %v2426
    %v2454 = vpack.c.bf16 %v2429, %v2428
    %v2455 = vpack.c.bf16 %v2431, %v2430
    %v2456 = vpack.c.bf16 %v2433, %v2432
    %v2457 = vpack.c.bf16 %v2435, %v2434
    %v2458 = vpack.c.bf16 %v2437, %v2436
    %v2459 = vpack.c.bf16 %v2439, %v2438
    %v2460 = vpack.c.bf16 %v2441, %v2440
    %v2461 = vpack.c.bf16 %v2443, %v2442
    %v2462 = vpack.c.bf16 %v2445, %v2444
    %v2463 = vpack.c.bf16 %v2447, %v2446
    %v2464 = vunpack.c.l.bf16 %v2448
    %v2465 = vunpack.c.h.bf16 %v2448
    %v2466 = vunpack.c.l.bf16 %v2449
    %v2467 = vunpack.c.h.bf16 %v2449
    %v2468 = vunpack.c.l.bf16 %v2450
    %v2469 = vunpack.c.h.bf16 %v2450
    %v2470 = vunpack.c.l.bf16 %v2451
    %v2471 = vunpack.c.h.bf16 %v2451
    %v2472 = vunpack.c.l.bf16 %v2452
    %v2473 = vunpack.c.h.bf16 %v2452
    %v2474 = vunpack.c.l.bf16 %v2453
    %v2475 = vunpack.c.h.bf16 %v2453
    %v2476 = vunpack.c.l.bf16 %v2454
    %v2477 = vunpack.c.h.bf16 %v2454
    %v2478 = vunpack.c.l.bf16 %v2455
    %v2479 = vunpack.c.h.bf16 %v2455
    %v2480 = vunpack.c.l.bf16 %v2456
    %v2481 = vunpack.c.h.bf16 %v2456
    %v2482 = vunpack.c.l.bf16 %v2457
    %v2483 = vunpack.c.h.bf16 %v2457
    %v2484 = vunpack.c.l.bf16 %v2458
    %v2485 = vunpack.c.h.bf16 %v2458
    %v2486 = vunpack.c.l.bf16 %v2459
    %v2487 = vunpack.c.h.bf16 %v2459
    %v2488 = vunpack.c.l.bf16 %v2460
    %v2489 = vunpack.c.h.bf16 %v2460
    %v2490 = vunpack.c.l.bf16 %v2461
    %v2491 = vunpack.c.h.bf16 %v2461
    %v2492 = vunpack.c.l.bf16 %v2462
    %v2493 = vunpack.c.h.bf16 %v2462
    %v2494 = vunpack.c.l.bf16 %v2463
    %v2495 = vunpack.c.h.bf16 %v2463
    %v2496 = vld [vmem:[%s5] sm:$0x3]
    %v2498 = vperm.slane %v2496, 0
    %v2499 = vperm.slane %v2496, 1
    %v2502 = vmul.f32 %v2464, %v2498
    %v2503 = vmul.f32 %v2465, %v2499
    %v2504 = vmul.f32 %v2466, %v2498
    %v2505 = vmul.f32 %v2467, %v2499
    %v2506 = vmul.f32 %v2468, %v2498
    %v2507 = vmul.f32 %v2469, %v2499
    %v2508 = vmul.f32 %v2470, %v2498
    %v2509 = vmul.f32 %v2471, %v2499
    %v2510 = vmul.f32 %v2472, %v2498
    %v2511 = vmul.f32 %v2473, %v2499
    %v2512 = vmul.f32 %v2474, %v2498
    %v2513 = vmul.f32 %v2475, %v2499
    %v2514 = vmul.f32 %v2476, %v2498
    %v2515 = vmul.f32 %v2477, %v2499
    %v2516 = vmul.f32 %v2478, %v2498
    %v2517 = vmul.f32 %v2479, %v2499
    %v2518 = vmul.f32 %v2480, %v2498
    %v2519 = vmul.f32 %v2481, %v2499
    %v2520 = vmul.f32 %v2482, %v2498
    %v2521 = vmul.f32 %v2483, %v2499
    %v2522 = vmul.f32 %v2484, %v2498
    %v2523 = vmul.f32 %v2485, %v2499
    %v2524 = vmul.f32 %v2486, %v2498
    %v2525 = vmul.f32 %v2487, %v2499
    %v2526 = vmul.f32 %v2488, %v2498
    %v2527 = vmul.f32 %v2489, %v2499
    %v2528 = vmul.f32 %v2490, %v2498
    %v2529 = vmul.f32 %v2491, %v2499
    %v2530 = vmul.f32 %v2492, %v2498
    %v2531 = vmul.f32 %v2493, %v2499
    %v2532 = vmul.f32 %v2494, %v2498
    %v2533 = vmul.f32 %v2495, %v2499
    %v2534 = vadd.f32 %v2502, %v2503
    %2535 = vadd.xlane.f32.xlu0 %v2534
    %v2536 = vpop.xlane.xlu0 %2535
    %v2537 = vadd.f32 %v2504, %v2505
    %2538 = vadd.xlane.f32.xlu0 %v2537
    %v2539 = vpop.xlane.xlu0 %2538
    %v2540 = vadd.f32 %v2506, %v2507
    %2541 = vadd.xlane.f32.xlu0 %v2540
    %v2542 = vpop.xlane.xlu0 %2541
    %v2543 = vadd.f32 %v2508, %v2509
    %2544 = vadd.xlane.f32.xlu0 %v2543
    %v2545 = vpop.xlane.xlu0 %2544
    %v2546 = vadd.f32 %v2510, %v2511
    %2547 = vadd.xlane.f32.xlu0 %v2546
    %v2548 = vpop.xlane.xlu0 %2547
    %v2549 = vadd.f32 %v2512, %v2513
    %2550 = vadd.xlane.f32.xlu0 %v2549
    %v2551 = vpop.xlane.xlu0 %2550
    %v2552 = vadd.f32 %v2514, %v2515
    %2553 = vadd.xlane.f32.xlu0 %v2552
    %v2554 = vpop.xlane.xlu0 %2553
    %v2555 = vadd.f32 %v2516, %v2517
    %2556 = vadd.xlane.f32.xlu0 %v2555
    %v2557 = vpop.xlane.xlu0 %2556
    %v2558 = vadd.f32 %v2518, %v2519
    %2559 = vadd.xlane.f32.xlu0 %v2558
    %v2560 = vpop.xlane.xlu0 %2559
    %v2561 = vadd.f32 %v2520, %v2521
    %2562 = vadd.xlane.f32.xlu0 %v2561
    %v2563 = vpop.xlane.xlu0 %2562
    %v2564 = vadd.f32 %v2522, %v2523
    %2565 = vadd.xlane.f32.xlu0 %v2564
    %v2566 = vpop.xlane.xlu0 %2565
    %v2567 = vadd.f32 %v2524, %v2525
    %2568 = vadd.xlane.f32.xlu0 %v2567
    %v2569 = vpop.xlane.xlu0 %2568
    %v2570 = vadd.f32 %v2526, %v2527
    %2571 = vadd.xlane.f32.xlu0 %v2570
    %v2572 = vpop.xlane.xlu0 %2571
    %v2573 = vadd.f32 %v2528, %v2529
    %2574 = vadd.xlane.f32.xlu0 %v2573
    %v2575 = vpop.xlane.xlu0 %2574
    %v2576 = vadd.f32 %v2530, %v2531
    %2577 = vadd.xlane.f32.xlu0 %v2576
    %v2578 = vpop.xlane.xlu0 %2577
    %v2579 = vadd.f32 %v2532, %v2533
    %2580 = vadd.xlane.f32.xlu0 %v2579
    %v2581 = vpop.xlane.xlu0 %2580
    %v2582 = vld [vmem:[#allocation2] sm:$0x1]
    %v2584 = vperm.slane %v2582, 0
    %v2586 = vadd.f32 %v2536, %v2584
    %v2587 = vadd.f32 %v2539, %v2584
    %v2588 = vadd.f32 %v2542, %v2584
    %v2589 = vadd.f32 %v2545, %v2584
    %v2590 = vadd.f32 %v2548, %v2584
    %v2591 = vadd.f32 %v2551, %v2584
    %v2592 = vadd.f32 %v2554, %v2584
    %v2593 = vadd.f32 %v2557, %v2584
    %v2594 = vadd.f32 %v2560, %v2584
    %v2595 = vadd.f32 %v2563, %v2584
    %v2596 = vadd.f32 %v2566, %v2584
    %v2597 = vadd.f32 %v2569, %v2584
    %v2598 = vadd.f32 %v2572, %v2584
    %v2599 = vadd.f32 %v2575, %v2584
    %v2600 = vadd.f32 %v2578, %v2584
    %v2601 = vadd.f32 %v2581, %v2584
    %vm2602 = vcmask 7168
    %2603 = vst.msk [vmem:[%s7] sm:$0xff] %vm2602, %v2586
    %2604 = vst.msk [vmem:[%s7 + $0x8] sm:$0xff] %vm2602, %v2587
    %2605 = vst.msk [vmem:[%s7 + $0x10] sm:$0xff] %vm2602, %v2588
    %2606 = vst.msk [vmem:[%s7 + $0x18] sm:$0xff] %vm2602, %v2589
    %2607 = vst.msk [vmem:[%s7 + $0x20] sm:$0xff] %vm2602, %v2590
    %2608 = vst.msk [vmem:[%s7 + $0x28] sm:$0xff] %vm2602, %v2591
    %2609 = vst.msk [vmem:[%s7 + $0x30] sm:$0xff] %vm2602, %v2592
    %2610 = vst.msk [vmem:[%s7 + $0x38] sm:$0xff] %vm2602, %v2593
    %2611 = vst.msk [vmem:[%s7 + $0x40] sm:$0xff] %vm2602, %v2594
    %2612 = vst.msk [vmem:[%s7 + $0x48] sm:$0xff] %vm2602, %v2595
    %2613 = vst.msk [vmem:[%s7 + $0x50] sm:$0xff] %vm2602, %v2596
    %2614 = vst.msk [vmem:[%s7 + $0x58] sm:$0xff] %vm2602, %v2597
    %2615 = vst.msk [vmem:[%s7 + $0x60] sm:$0xff] %vm2602, %v2598
    %2616 = vst.msk [vmem:[%s7 + $0x68] sm:$0xff] %vm2602, %v2599
    %2617 = vst.msk [vmem:[%s7 + $0x70] sm:$0xff] %vm2602, %v2600
    %2618 = vst.msk [vmem:[%s7 + $0x78] sm:$0xff] %vm2602, %v2601
    // Predicated region
    $region38: #{discriminator_forward.1} parent=1 // pred_check
      _
    $region39: #{discriminator_forward.1} parent=1 // pred_check_branch
      %2620 = sbr.rel (0) target = $region41
    $region40: #{discriminator_forward.1} parent=1 // pred_region
      _
    $region41: #{discriminator_forward.1} parent=1 // pred_fallthru
      _
    // Predicated region
    $region42: #{discriminator_forward.1} parent=1 // pred_check
      _
    $region43: #{discriminator_forward.1} parent=1 // pred_check_branch
      %2622 = sbr.rel (0) target = $region45
    $region44: #{discriminator_forward.1} parent=1 // pred_region
      _
    $region45: #{discriminator_forward.1} parent=1 // pred_fallthru
      _
    %2623 = vsyncpa [#allocation4], 1
    %2624 = vsyncpa [#allocation6], 1

</llo_original>
